<compile_context>
chip_gen: v7x
topology: tpu7x:2x2x1
jax: 0.10.0
libtpu: 0.0.40
codegen_flags: <defaults>
</compile_context>

<pallas_src>
import math
import jax
import jax.numpy as jnp
import numpy as np
from jax.experimental import pallas as pl
from jax.experimental.pallas import tpu as pltpu

# ----- module hyper-parameters (constants referenced by the PyTorch code) ---
H_DIM = 32
EMBEDDING_DIM = 16
BOTTLENECK_DIM = 32
MLP_DIM = 64                 # stored on the module but unused in forward()
MLP_PRE_HID = 512            # hard-coded hidden width of mlp_pre_pool
MAX_CONSIDERED_PED = 4
ACTIVATION_RELU = 'relu'
BATCH_NORM = False           # eval-mode BN would fold into the linear weights
DROPOUT = 0.0

PACKED_IN = H_DIM + 2 + 1    # packed activation columns: [h(32) | relx | rely | mask]


# ---------------------------------------------------------------------------
# Pallas kernel: one grid step == TN pedestrians (all MAX slots of each)
# ---------------------------------------------------------------------------
def attention_kernel(x_ref, w1h_ref, w1e_ref, bvec_ref, b1_ref,
                     w2_ref, b2_ref, wattn_ref, battn_ref, out_ref):
    """Block shapes (per grid step):

    x_ref    : (1, MAX*TN, 35) bf16  packed [h | relx | rely | mask], slot-major rows
    w1h      : (H, 512)  bf16        mlp_pre_pool layer-1 weight, h part
    w1e      : (2, 512)  f32         folded pos_embedding weight  (w_pos @ w1[H:])
    bvec     : (1, 512)  f32         folded pos_embedding bias    (b_pos @ w1[H:])
    b1       : (1, 512)  f32         layer-1 bias
    w2       : (512, B)  bf16 , b2 : (1, B) f32     layer-2
    wattn    : (MAX*B, MAX) bf16, battn : (1, MAX) f32
    out_ref  : (TN, B)   f32
    """
    tn, bdim = out_ref.shape
    hdim = w1h_ref.shape[0]
    maxp = wattn_ref.shape[1]

    x = x_ref[0]                                           # (MAX*TN, 35) bf16
    h = x[:, :hdim]                                        # bf16 MXU operand
    relx = x[:, hdim:hdim + 1].astype(jnp.float32)
    rely = x[:, hdim + 1:hdim + 2].astype(jnp.float32)
    msk = x[:, hdim + 2:hdim + 3].astype(jnp.float32)

    # ---- layer 1: single K=32 bf16 MXU dot + folded pos-embedding on the VPU ----
    w1e = w1e_ref[...]
    z1 = jnp.dot(h, w1h_ref[...], preferred_element_type=jnp.float32)
    z1 = z1 + relx * w1e[0:1, :] + rely * w1e[1:2, :] + msk * bvec_ref[...] + b1_ref[...]
    z1 = jnp.maximum(z1, 0.0)                              # (MAX*TN, 512) f32

    # ---- layer 2: bf16 MXU dot, f32 accumulate ----
    z2 = jnp.dot(z1.astype(jnp.bfloat16), w2_ref[...],
                 preferred_element_type=jnp.float32) + b2_ref[...]
    z2 = jnp.maximum(z2, 0.0)                              # (MAX*TN, B) f32

    # ---- attention logits: attn(attn_h.view(N, MAX*B)) ----
    # Slot-major rows => slot k of every ped in this tile is the static sublane
    # slice z2[k*TN:(k+1)*TN]; the (TN, MAX*B)@(MAX*B, MAX) linear decomposes into
    # MAX tiny static-slice dots with no in-kernel reshape/transpose.
    z2b = z2.astype(jnp.bfloat16)
    logits = jnp.zeros((tn, maxp), jnp.float32) + battn_ref[...]
    for k in range(maxp):
        logits = logits + jnp.dot(z2b[k * tn:(k + 1) * tn, :],
                                  wattn_ref[k * bdim:(k + 1) * bdim, :],
                                  preferred_element_type=jnp.float32)

    # ---- stable softmax over the MAX slots (EUP exp + approx reciprocal) ----
    m = jnp.max(logits, axis=1, keepdims=True)
    e = jnp.exp(logits - m)
    attn_w = e * pl.reciprocal(jnp.sum(e, axis=1, keepdims=True), approx=True)

    # ---- attention-weighted pooling over slots ----
    acc = jnp.zeros((tn, bdim), jnp.float32)
    for k in range(maxp):
        acc = acc + z2[k * tn:(k + 1) * tn, :] * attn_w[:, k:k + 1]

    # TODO(synk): output stays (TN, 32) f32 (lane-sparse store); pack to a 128-lane
    # slab / fuse the consumer only if the store path ever becomes the bottleneck.
    out_ref[...] = acc


# ---------------------------------------------------------------------------
# Parameters (PyTorch-style uniform +-1/sqrt(fan_in), stored transposed)
# ---------------------------------------------------------------------------
def make_params(key):
    ks = jax.random.split(key, 8)

    def unif(k, shape, fan):
        bound = 1.0 / math.sqrt(fan)
        return jax.random.uniform(k, shape, jnp.float32, -bound, bound)

    E, H, B, M, P = EMBEDDING_DIM, H_DIM, BOTTLENECK_DIM, MAX_CONSIDERED_PED, MLP_PRE_HID
    return {
        # nn.Linear(2, E)
        "w_pos": unif(ks[0], (2, E), 2),
        "b_pos": unif(ks[1], (1, E), 2),
        # mlp_pre_pool: Linear(H+E, 512) + ReLU, Linear(512, B) + ReLU
        "w1": unif(ks[2], (H + E, P), H + E),
        "b1": unif(ks[3], (1, P), H + E),
        "w2": unif(ks[4], (P, B), P),
        "b2": unif(ks[5], (1, B), P),
        # attn: nn.Linear(MAX*B, MAX)
        "w_attn": unif(ks[6], (M * B, M), M * B),
        "b_attn": unif(ks[7], (1, M), M * B),
    }


# ---------------------------------------------------------------------------
# Wrapper: per-sequence neighbour selection / padding, packing, one pallas_call
# ---------------------------------------------------------------------------
def _round_up(a, b):
    return ((a + b - 1) // b) * b


def _gather_slots(h_flat, last_pos, seq_start_end):
    """Reproduces the per-sequence slot assembly of AttentionModule.forward.

    TODO(synk): this is a data-dependent Python loop over sequences (variable num_ped,
    host-side argsort semantics of the PyTorch code); it is bookkeeping on tiny tensors
    and is intentionally kept outside the Pallas kernel.
    """
    M, H = MAX_CONSIDERED_PED, H_DIM
    h_blocks, rel_blocks, mask_blocks = [], [], []
    for (start, end) in seq_start_end:
        n = end - start
        hid = h_flat[start:end]                       # (n, H)
        pos = last_pos[start:end]                     # (n, 2)
        if n < M:
            pad = M - n
            hb = jnp.broadcast_to(hid[None, :, :], (n, n, H))        # [i,j]=hid[j]
            hb = jnp.pad(hb, ((0, 0), (0, pad), (0, 0)))
            rel = pos[None, :, :] - pos[:, None, :]                  # pos[j]-pos[i]
            rel = jnp.pad(rel, ((0, 0), (0, pad), (0, 0)))
            msk = jnp.pad(jnp.ones((n, n, 1), jnp.float32),
                          ((0, 0), (0, pad), (0, 0)))
        else:
            # squareform(pdist(.)) -> row-wise argsort -> inverse permutation,
            # first MAX columns (exact semantics of the PyTorch sort branch).
            dist = jnp.sqrt(jnp.sum((pos[:, None, :] - pos[None, :, :]) ** 2, -1))
            order = jnp.argsort(dist, axis=1)
            rank = jnp.argsort(order, axis=1)
            sel = rank[:, :M]                                        # (n, MAX)
            hb = hid[sel]                                            # (n, MAX, H)
            rel = pos[sel] - pos[:, None, :]                         # (n, MAX, 2)
            msk = jnp.ones((n, M, 1), jnp.float32)
        h_blocks.append(hb)
        rel_blocks.append(rel)
        mask_blocks.append(msk)
    h_all = jnp.concatenate(h_blocks, axis=0)        # (N, MAX, H)
    rel_all = jnp.concatenate(rel_blocks, axis=0)    # (N, MAX, 2)
    mask_all = jnp.concatenate(mask_blocks, axis=0)  # (N, MAX, 1)
    return h_all, rel_all, mask_all


def attention_forward(h_states, seq_start_end, last_pos, params,
                      train_or_test=0, label=None, tile_n=256):
    H, M, B = H_DIM, MAX_CONSIDERED_PED, BOTTLENECK_DIM

    h_flat = h_states.reshape(-1, H).astype(jnp.float32)
    last_pos = last_pos.astype(jnp.float32)
    h_all, rel_all, mask_all = _gather_slots(h_flat, last_pos, seq_start_end)
    n_total = h_all.shape[0]

    # ---- pick ped tile (multiple of 16 for clean bf16 sublane packing) -------
    tn = max(16, min(_round_up(tile_n, 16), _round_up(n_total, 16)))
    n_pad = _round_up(n_total, tn)
    num_tiles = n_pad // tn

    # ---- pack activations: one bf16 array, columns [h | relx | rely | mask] --
    feats = jnp.concatenate([h_all, rel_all, mask_all], axis=-1)     # (N, MAX, 35) f32
    feats = feats.astype(jnp.bfloat16)
    feats = jnp.pad(feats, ((0, n_pad - n_total), (0, 0), (0, 0)))   # padded peds: mask=0
    # tile-major, slot-major rows inside each tile: x[t, k*tn + r] = feats[t*tn + r, k]
    x_tiles = (feats.reshape(num_tiles, tn, M, PACKED_IN)
                    .transpose(0, 2, 1, 3)
                    .reshape(num_tiles, M * tn, PACKED_IN))

    # ---- fold pos_embedding into layer 1; cast MXU weights to bf16 -----------
    w1e_full = params["w1"][H:]                                       # (E, 512) f32
    w1h = params["w1"][:H].astype(jnp.bfloat16)                       # (H, 512)
    w1e_fold = (params["w_pos"] @ w1e_full).astype(jnp.float32)       # (2, 512)
    bvec = (params["b_pos"] @ w1e_full).astype(jnp.float32)           # (1, 512)
    b1 = params["b1"].astype(jnp.float32)
    w2 = params["w2"].astype(jnp.bfloat16)                            # (512, B)
    b2 = params["b2"].astype(jnp.float32)
    wattn = params["w_attn"].astype(jnp.bfloat16)                     # (MAX*B, MAX)
    battn = params["b_attn"].astype(jnp.float32)

    def resident(arr):                       # weights: same block every grid step
        return pl.BlockSpec(arr.shape, lambda i: (0,) * arr.ndim)

    out = pl.pallas_call(
        attention_kernel,
        out_shape=jax.ShapeDtypeStruct((n_pad, B), jnp.float32),
        grid_spec=pltpu.PrefetchScalarGridSpec(
            num_scalar_prefetch=0,
            grid=(num_tiles,),
            in_specs=[
                pl.BlockSpec((1, M * tn, PACKED_IN), lambda i: (i, 0, 0)),
                resident(w1h), resident(w1e_fold), resident(bvec), resident(b1),
                resident(w2), resident(b2), resident(wattn), resident(battn),
            ],
            out_specs=pl.BlockSpec((tn, B), lambda i: (i, 0)),
        ),
        compiler_params=pltpu.CompilerParams(
            dimension_semantics=("parallel",),          # shard ped tiles across TCs (v7x)
            vmem_limit_bytes=32 * 1024 * 1024),         # safe on v5e/v6e/v7x
    )(x_tiles, w1h, w1e_fold, bvec, b1, w2, b2, wattn, battn)

    return out[:n_total]                                 # (N_total, BOTTLENECK_DIM)


# ---------------------------------------------------------------------------
# Pure-JAX f32 reference following the PyTorch forward step by step
# ---------------------------------------------------------------------------
def reference_forward(h_states, seq_start_end, last_pos, params):
    M, H, E, B = MAX_CONSIDERED_PED, H_DIM, EMBEDDING_DIM, BOTTLENECK_DIM
    h_flat = h_states.reshape(-1, H)
    outs = []
    for (start, end) in seq_start_end:
        n = end - start
        hid = h_flat[start:end]
        pos = last_pos[start:end]
        repeat_h = jnp.broadcast_to(hid[None, :, :], (n, n, H))      # [i,j]=hid[j]
        social = pos[None, :, :] - pos[:, None, :]                   # pos[j]-pos[i]
        if n < M:
            emb = social.reshape(-1, 2) @ params["w_pos"] + params["b_pos"]
            h_z = jnp.zeros((n, M, H)).at[:, :n, :].set(repeat_h)
            f_z = jnp.zeros((n, M, E)).at[:, :n, :].set(emb.reshape(n, n, E))
            concat = jnp.concatenate([h_z.reshape(-1, H), f_z.reshape(-1, E)], axis=1)
        else:
            dist = jnp.sqrt(jnp.sum((pos[:, None, :] - pos[None, :, :]) ** 2, -1))
            order = jnp.argsort(dist, axis=1)
            rank = jnp.argsort(order, axis=1)
            sel = rank[:, :M]
            req_h = hid[sel]
            req_f = pos[sel] - pos[:, None, :]
            emb = req_f.reshape(-1, 2) @ params["w_pos"] + params["b_pos"]
            concat = jnp.concatenate([req_h.reshape(-1, H), emb.reshape(-1, E)], axis=1)
        z1 = jnp.maximum(concat @ params["w1"] + params["b1"], 0.0)
        z2 = jnp.maximum(z1 @ params["w2"] + params["b2"], 0.0)
        attn_h = z2.reshape(n, M, B)
        logits = attn_h.reshape(n, M * B) @ params["w_attn"] + params["b_attn"]
        w = jax.nn.softmax(logits, axis=1)
        outs.append(jnp.sum(attn_h * w[:, :, None], axis=1))
    return jnp.concatenate(outs, axis=0)


if __name__ == "__main__":
    key = jax.random.PRNGKey(0)
    k_h, k_pos, k_par = jax.random.split(key, 3)

    # Three sequences: one with num_ped < MAX (padding branch), two with
    # num_ped >= MAX (neighbour-ranking branch). tile_n=16 => grid of 2 steps
    # with pipelined tiles and padded pedestrians in the last tile.
    seq_start_end = [(0, 3), (3, 8), (8, 20)]
    n_total = 20

    h_states = jax.random.normal(k_h, (1, n_total, H_DIM), jnp.float32)
    last_pos = 3.0 * jax.random.normal(k_pos, (n_total, 2), jnp.float32)
    params = make_params(k_par)

    out = attention_forward(h_states, seq_start_end, last_pos, params, tile_n=16)
    out = jax.block_until_ready(out)

    ref = reference_forward(h_states, seq_start_end, last_pos, params)
    # Tolerance reflects bf16 MXU operands (f32 accumulation) vs the f32 reference.
    np.testing.assert_allclose(np.asarray(out), np.asarray(ref), rtol=3e-2, atol=3e-2)
    assert out.shape == (n_total, BOTTLENECK_DIM)
    assert bool(jnp.all(jnp.isfinite(out)))
    print("KERNEL_OK")
</pallas_src>

<mosaic_0001>
module attributes {stable_mosaic.version = 11 : i64} {
  func.func @attention_kernel(%arg0: i32, %arg1: memref<1x64x35xbf16, #tpu.memory_space<vmem>>, %arg2: memref<32x512xbf16, #tpu.memory_space<vmem>>, %arg3: memref<2x512xf32, #tpu.memory_space<vmem>>, %arg4: memref<1x512xf32, #tpu.memory_space<vmem>>, %arg5: memref<1x512xf32, #tpu.memory_space<vmem>>, %arg6: memref<512x32xbf16, #tpu.memory_space<vmem>>, %arg7: memref<1x32xf32, #tpu.memory_space<vmem>>, %arg8: memref<128x4xbf16, #tpu.memory_space<vmem>>, %arg9: memref<1x4xf32, #tpu.memory_space<vmem>>, %arg10: memref<16x32xf32, #tpu.memory_space<vmem>>) attributes {dimension_semantics = [#tpu.dimension_semantics<parallel>], iteration_bounds = array<i64: 2>, scalar_prefetch = 0 : i64, scratch_operands = 0 : i64, tpu.core_type = #tpu.core_type<tc>, window_params = [{transform_indices = @transform_0, window_bounds = array<i64: 1, 64, 35>}, {pipeline_mode = #tpu.pipeline_mode<synchronous>, transform_indices = @transform_1, window_bounds = array<i64: 32, 512>}, {pipeline_mode = #tpu.pipeline_mode<synchronous>, transform_indices = @transform_2, window_bounds = array<i64: 2, 512>}, {pipeline_mode = #tpu.pipeline_mode<synchronous>, transform_indices = @transform_3, window_bounds = array<i64: 1, 512>}, {pipeline_mode = #tpu.pipeline_mode<synchronous>, transform_indices = @transform_4, window_bounds = array<i64: 1, 512>}, {pipeline_mode = #tpu.pipeline_mode<synchronous>, transform_indices = @transform_5, window_bounds = array<i64: 512, 32>}, {pipeline_mode = #tpu.pipeline_mode<synchronous>, transform_indices = @transform_6, window_bounds = array<i64: 1, 32>}, {pipeline_mode = #tpu.pipeline_mode<synchronous>, transform_indices = @transform_7, window_bounds = array<i64: 128, 4>}, {pipeline_mode = #tpu.pipeline_mode<synchronous>, transform_indices = @transform_8, window_bounds = array<i64: 1, 4>}, {transform_indices = @transform_9, window_bounds = array<i64: 16, 32>}]} {
    %c0 = arith.constant 0 : index
    %c0_0 = arith.constant 0 : index
    %c0_1 = arith.constant 0 : index
    %0 = vector.load %arg1[%c0, %c0_0, %c0_1] : memref<1x64x35xbf16, #tpu.memory_space<vmem>>, vector<1x64x35xbf16>
    %1 = vector.shape_cast %0 : vector<1x64x35xbf16> to vector<64x35xbf16>
    %2 = vector.extract_strided_slice %1 {offsets = [0, 0], sizes = [64, 32], strides = [1, 1]} : vector<64x35xbf16> to vector<64x32xbf16>
    %3 = vector.extract_strided_slice %1 {offsets = [0, 32], sizes = [64, 1], strides = [1, 1]} : vector<64x35xbf16> to vector<64x1xbf16>
    %4 = arith.extf %3 : vector<64x1xbf16> to vector<64x1xf32>
    %5 = vector.extract_strided_slice %1 {offsets = [0, 33], sizes = [64, 1], strides = [1, 1]} : vector<64x35xbf16> to vector<64x1xbf16>
    %6 = arith.extf %5 : vector<64x1xbf16> to vector<64x1xf32>
    %7 = vector.extract_strided_slice %1 {offsets = [0, 34], sizes = [64, 1], strides = [1, 1]} : vector<64x35xbf16> to vector<64x1xbf16>
    %8 = arith.extf %7 : vector<64x1xbf16> to vector<64x1xf32>
    %c0_2 = arith.constant 0 : index
    %c0_3 = arith.constant 0 : index
    %9 = vector.load %arg3[%c0_2, %c0_3] : memref<2x512xf32, #tpu.memory_space<vmem>>, vector<2x512xf32>
    %c0_4 = arith.constant 0 : index
    %c0_5 = arith.constant 0 : index
    %10 = vector.load %arg2[%c0_4, %c0_5] : memref<32x512xbf16, #tpu.memory_space<vmem>>, vector<32x512xbf16>
    %cst = arith.constant dense<0.000000e+00> : vector<64x512xf32>
    %11 = tpu.matmul %2, %10, %cst {dimension_numbers = #tpu.dot_dimension_numbers<[1], [0], [0], [1], [0, 0, 1, 1], [], []>} : vector<64x32xbf16>, vector<32x512xbf16>, vector<64x512xf32> -> vector<64x512xf32>
    %12 = vector.extract_strided_slice %9 {offsets = [0, 0], sizes = [1, 512], strides = [1, 1]} : vector<2x512xf32> to vector<1x512xf32>
    %13 = vector.broadcast %4 : vector<64x1xf32> to vector<64x512xf32>
    %14 = vector.broadcast %12 : vector<1x512xf32> to vector<64x512xf32>
    %15 = arith.mulf %13, %14 : vector<64x512xf32>
    %16 = arith.addf %11, %15 : vector<64x512xf32>
    %17 = vector.extract_strided_slice %9 {offsets = [1, 0], sizes = [1, 512], strides = [1, 1]} : vector<2x512xf32> to vector<1x512xf32>
    %18 = vector.broadcast %6 : vector<64x1xf32> to vector<64x512xf32>
    %19 = vector.broadcast %17 : vector<1x512xf32> to vector<64x512xf32>
    %20 = arith.mulf %18, %19 : vector<64x512xf32>
    %21 = arith.addf %16, %20 : vector<64x512xf32>
    %c0_6 = arith.constant 0 : index
    %c0_7 = arith.constant 0 : index
    %22 = vector.load %arg4[%c0_6, %c0_7] : memref<1x512xf32, #tpu.memory_space<vmem>>, vector<1x512xf32>
    %23 = vector.broadcast %8 : vector<64x1xf32> to vector<64x512xf32>
    %24 = vector.broadcast %22 : vector<1x512xf32> to vector<64x512xf32>
    %25 = arith.mulf %23, %24 : vector<64x512xf32>
    %26 = arith.addf %21, %25 : vector<64x512xf32>
    %c0_8 = arith.constant 0 : index
    %c0_9 = arith.constant 0 : index
    %27 = vector.load %arg5[%c0_8, %c0_9] : memref<1x512xf32, #tpu.memory_space<vmem>>, vector<1x512xf32>
    %28 = vector.broadcast %27 : vector<1x512xf32> to vector<64x512xf32>
    %29 = arith.addf %26, %28 : vector<64x512xf32>
    %cst_10 = arith.constant 0.000000e+00 : f32
    %30 = vector.broadcast %cst_10 : f32 to vector<64x512xf32>
    %31 = arith.maximumf %29, %30 : vector<64x512xf32>
    %32 = arith.truncf %31 : vector<64x512xf32> to vector<64x512xbf16>
    %c0_11 = arith.constant 0 : index
    %c0_12 = arith.constant 0 : index
    %33 = vector.load %arg6[%c0_11, %c0_12] : memref<512x32xbf16, #tpu.memory_space<vmem>>, vector<512x32xbf16>
    %cst_13 = arith.constant dense<0.000000e+00> : vector<64x32xf32>
    %34 = tpu.matmul %32, %33, %cst_13 {dimension_numbers = #tpu.dot_dimension_numbers<[1], [0], [0], [1], [0, 0, 1, 1], [], []>} : vector<64x512xbf16>, vector<512x32xbf16>, vector<64x32xf32> -> vector<64x32xf32>
    %c0_14 = arith.constant 0 : index
    %c0_15 = arith.constant 0 : index
    %35 = vector.load %arg7[%c0_14, %c0_15] : memref<1x32xf32, #tpu.memory_space<vmem>>, vector<1x32xf32>
    %36 = vector.broadcast %35 : vector<1x32xf32> to vector<64x32xf32>
    %37 = arith.addf %34, %36 : vector<64x32xf32>
    %cst_16 = arith.constant 0.000000e+00 : f32
    %38 = vector.broadcast %cst_16 : f32 to vector<64x32xf32>
    %39 = arith.maximumf %37, %38 : vector<64x32xf32>
    %40 = arith.truncf %39 : vector<64x32xf32> to vector<64x32xbf16>
    %cst_17 = arith.constant 0.000000e+00 : f32
    %41 = vector.broadcast %cst_17 : f32 to vector<16x4xf32>
    %c0_18 = arith.constant 0 : index
    %c0_19 = arith.constant 0 : index
    %42 = vector.load %arg9[%c0_18, %c0_19] : memref<1x4xf32, #tpu.memory_space<vmem>>, vector<1x4xf32>
    %43 = vector.broadcast %42 : vector<1x4xf32> to vector<16x4xf32>
    %44 = arith.addf %41, %43 : vector<16x4xf32>
    %45 = vector.extract_strided_slice %40 {offsets = [0, 0], sizes = [16, 32], strides = [1, 1]} : vector<64x32xbf16> to vector<16x32xbf16>
    %c0_20 = arith.constant 0 : index
    %c0_21 = arith.constant 0 : index
    %46 = vector.load %arg8[%c0_20, %c0_21] : memref<128x4xbf16, #tpu.memory_space<vmem>>, vector<32x4xbf16>
    %cst_22 = arith.constant dense<0.000000e+00> : vector<16x4xf32>
    %47 = tpu.matmul %45, %46, %cst_22 {dimension_numbers = #tpu.dot_dimension_numbers<[1], [0], [0], [1], [0, 0, 1, 1], [], []>} : vector<16x32xbf16>, vector<32x4xbf16>, vector<16x4xf32> -> vector<16x4xf32>
    %48 = arith.addf %44, %47 : vector<16x4xf32>
    %49 = vector.extract_strided_slice %40 {offsets = [16, 0], sizes = [16, 32], strides = [1, 1]} : vector<64x32xbf16> to vector<16x32xbf16>
    %c32 = arith.constant 32 : index
    %c0_23 = arith.constant 0 : index
    %50 = vector.load %arg8[%c32, %c0_23] : memref<128x4xbf16, #tpu.memory_space<vmem>>, vector<32x4xbf16>
    %cst_24 = arith.constant dense<0.000000e+00> : vector<16x4xf32>
    %51 = tpu.matmul %49, %50, %cst_24 {dimension_numbers = #tpu.dot_dimension_numbers<[1], [0], [0], [1], [0, 0, 1, 1], [], []>} : vector<16x32xbf16>, vector<32x4xbf16>, vector<16x4xf32> -> vector<16x4xf32>
    %52 = arith.addf %48, %51 : vector<16x4xf32>
    %53 = vector.extract_strided_slice %40 {offsets = [32, 0], sizes = [16, 32], strides = [1, 1]} : vector<64x32xbf16> to vector<16x32xbf16>
    %c64 = arith.constant 64 : index
    %c0_25 = arith.constant 0 : index
    %54 = vector.load %arg8[%c64, %c0_25] : memref<128x4xbf16, #tpu.memory_space<vmem>>, vector<32x4xbf16>
    %cst_26 = arith.constant dense<0.000000e+00> : vector<16x4xf32>
    %55 = tpu.matmul %53, %54, %cst_26 {dimension_numbers = #tpu.dot_dimension_numbers<[1], [0], [0], [1], [0, 0, 1, 1], [], []>} : vector<16x32xbf16>, vector<32x4xbf16>, vector<16x4xf32> -> vector<16x4xf32>
    %56 = arith.addf %52, %55 : vector<16x4xf32>
    %57 = vector.extract_strided_slice %40 {offsets = [48, 0], sizes = [16, 32], strides = [1, 1]} : vector<64x32xbf16> to vector<16x32xbf16>
    %c96 = arith.constant 96 : index
    %c0_27 = arith.constant 0 : index
    %58 = vector.load %arg8[%c96, %c0_27] : memref<128x4xbf16, #tpu.memory_space<vmem>>, vector<32x4xbf16>
    %cst_28 = arith.constant dense<0.000000e+00> : vector<16x4xf32>
    %59 = tpu.matmul %57, %58, %cst_28 {dimension_numbers = #tpu.dot_dimension_numbers<[1], [0], [0], [1], [0, 0, 1, 1], [], []>} : vector<16x32xbf16>, vector<32x4xbf16>, vector<16x4xf32> -> vector<16x4xf32>
    %60 = arith.addf %56, %59 : vector<16x4xf32>
    %cst_29 = arith.constant dense<0xFF800000> : vector<16xf32>
    %61 = vector.multi_reduction <maximumf>, %60, %cst_29 [1] : vector<16x4xf32> to vector<16xf32>
    %62 = vector.shape_cast %61 : vector<16xf32> to vector<16x1xf32>
    %63 = vector.broadcast %62 : vector<16x1xf32> to vector<16x4xf32>
    %64 = arith.subf %60, %63 : vector<16x4xf32>
    %65 = math.exp %64 : vector<16x4xf32>
    %cst_30 = arith.constant dense<0.000000e+00> : vector<16xf32>
    %66 = vector.multi_reduction <add>, %65, %cst_30 [1] : vector<16x4xf32> to vector<16xf32>
    %67 = vector.shape_cast %66 : vector<16xf32> to vector<16x1xf32>
    %68 = tpu.reciprocal %67 {approx = true} : vector<16x1xf32> -> vector<16x1xf32>
    %69 = vector.broadcast %68 : vector<16x1xf32> to vector<16x4xf32>
    %70 = arith.mulf %65, %69 : vector<16x4xf32>
    %cst_31 = arith.constant 0.000000e+00 : f32
    %71 = vector.broadcast %cst_31 : f32 to vector<16x32xf32>
    %72 = vector.extract_strided_slice %39 {offsets = [0, 0], sizes = [16, 32], strides = [1, 1]} : vector<64x32xf32> to vector<16x32xf32>
    %73 = vector.extract_strided_slice %70 {offsets = [0, 0], sizes = [16, 1], strides = [1, 1]} : vector<16x4xf32> to vector<16x1xf32>
    %74 = vector.broadcast %73 : vector<16x1xf32> to vector<16x32xf32>
    %75 = arith.mulf %72, %74 : vector<16x32xf32>
    %76 = arith.addf %71, %75 : vector<16x32xf32>
    %77 = vector.extract_strided_slice %39 {offsets = [16, 0], sizes = [16, 32], strides = [1, 1]} : vector<64x32xf32> to vector<16x32xf32>
    %78 = vector.extract_strided_slice %70 {offsets = [0, 1], sizes = [16, 1], strides = [1, 1]} : vector<16x4xf32> to vector<16x1xf32>
    %79 = vector.broadcast %78 : vector<16x1xf32> to vector<16x32xf32>
    %80 = arith.mulf %77, %79 : vector<16x32xf32>
    %81 = arith.addf %76, %80 : vector<16x32xf32>
    %82 = vector.extract_strided_slice %39 {offsets = [32, 0], sizes = [16, 32], strides = [1, 1]} : vector<64x32xf32> to vector<16x32xf32>
    %83 = vector.extract_strided_slice %70 {offsets = [0, 2], sizes = [16, 1], strides = [1, 1]} : vector<16x4xf32> to vector<16x1xf32>
    %84 = vector.broadcast %83 : vector<16x1xf32> to vector<16x32xf32>
    %85 = arith.mulf %82, %84 : vector<16x32xf32>
    %86 = arith.addf %81, %85 : vector<16x32xf32>
    %87 = vector.extract_strided_slice %39 {offsets = [48, 0], sizes = [16, 32], strides = [1, 1]} : vector<64x32xf32> to vector<16x32xf32>
    %88 = vector.extract_strided_slice %70 {offsets = [0, 3], sizes = [16, 1], strides = [1, 1]} : vector<16x4xf32> to vector<16x1xf32>
    %89 = vector.broadcast %88 : vector<16x1xf32> to vector<16x32xf32>
    %90 = arith.mulf %87, %89 : vector<16x32xf32>
    %91 = arith.addf %86, %90 : vector<16x32xf32>
    %c0_32 = arith.constant 0 : index
    %c0_33 = arith.constant 0 : index
    %92 = vector.load %arg10[%c0_32, %c0_33] : memref<16x32xf32, #tpu.memory_space<vmem>>, vector<16x32xf32>
    tpu.vector_store %arg10[%c0_32, %c0_33], %91 {strides = array<i32>} : memref<16x32xf32, #tpu.memory_space<vmem>>, vector<16x32xf32>,
    return
  }
  func.func @transform_0(%arg0: i32) -> (i32, i32, i32) {
    %c0_i32 = arith.constant 0 : i32
    %c0_i32_0 = arith.constant 0 : i32
    %c0_i32_1 = arith.constant 0 : i32
    return %arg0, %c0_i32, %c0_i32_0 : i32, i32, i32
  }
  func.func @transform_1(%arg0: i32) -> (i32, i32) {
    %c0_i32 = arith.constant 0 : i32
    %c0_i32_0 = arith.constant 0 : i32
    %c0_i32_1 = arith.constant 0 : i32
    return %c0_i32, %c0_i32_0 : i32, i32
  }
  func.func @transform_2(%arg0: i32) -> (i32, i32) {
    %c0_i32 = arith.constant 0 : i32
    %c0_i32_0 = arith.constant 0 : i32
    %c0_i32_1 = arith.constant 0 : i32
    return %c0_i32, %c0_i32_0 : i32, i32
  }
  func.func @transform_3(%arg0: i32) -> (i32, i32) {
    %c0_i32 = arith.constant 0 : i32
    %c0_i32_0 = arith.constant 0 : i32
    %c0_i32_1 = arith.constant 0 : i32
    return %c0_i32, %c0_i32_0 : i32, i32
  }
  func.func @transform_4(%arg0: i32) -> (i32, i32) {
    %c0_i32 = arith.constant 0 : i32
    %c0_i32_0 = arith.constant 0 : i32
    %c0_i32_1 = arith.constant 0 : i32
    return %c0_i32, %c0_i32_0 : i32, i32
  }
  func.func @transform_5(%arg0: i32) -> (i32, i32) {
    %c0_i32 = arith.constant 0 : i32
    %c0_i32_0 = arith.constant 0 : i32
    %c0_i32_1 = arith.constant 0 : i32
    return %c0_i32, %c0_i32_0 : i32, i32
  }
  func.func @transform_6(%arg0: i32) -> (i32, i32) {
    %c0_i32 = arith.constant 0 : i32
    %c0_i32_0 = arith.constant 0 : i32
    %c0_i32_1 = arith.constant 0 : i32
    return %c0_i32, %c0_i32_0 : i32, i32
  }
  func.func @transform_7(%arg0: i32) -> (i32, i32) {
    %c0_i32 = arith.constant 0 : i32
    %c0_i32_0 = arith.constant 0 : i32
    %c0_i32_1 = arith.constant 0 : i32
    return %c0_i32, %c0_i32_0 : i32, i32
  }
  func.func @transform_8(%arg0: i32) -> (i32, i32) {
    %c0_i32 = arith.constant 0 : i32
    %c0_i32_0 = arith.constant 0 : i32
    %c0_i32_1 = arith.constant 0 : i32
    return %c0_i32, %c0_i32_0 : i32, i32
  }
  func.func @transform_9(%arg0: i32) -> (i32, i32) {
    %c0_i32 = arith.constant 0 : i32
    %c0_i32_0 = arith.constant 0 : i32
    return %arg0, %c0_i32 : i32, i32
  }
}

</mosaic_0001>

<llo_original>
// kernel: tpu_custom_call.1
$region0: #{tpu_custom_call.1}
  #allocation0 [shape = 'u32[]', space=smem, size = 0x4, offset = 0x4, fixed_abs, tag = 'smem constant byte address 0x4 - core index']
  #allocation1 [shape = 'u32[144,128]{1,0:T(1,128)}', space=vmem, size = 0x12000, scoped, tag = 'internal scratch']
  %s0 = inlined_call_operand.vmem [shape: bf16[2,64,35], index: 0, kind: input, shape index: {}]
  %s1 = inlined_call_operand.vmem [shape: bf16[32,512], index: 1, kind: input, shape index: {}]
  %s2 = inlined_call_operand.vmem [shape: f32[2,512], index: 2, kind: input, shape index: {}]
  %s3 = inlined_call_operand.vmem [shape: f32[1,512], index: 3, kind: input, shape index: {}]
  %s4 = inlined_call_operand.vmem [shape: f32[1,512], index: 4, kind: input, shape index: {}]
  %s5 = inlined_call_operand.vmem [shape: bf16[512,32], index: 5, kind: input, shape index: {}]
  %s6 = inlined_call_operand.vmem [shape: f32[1,32], index: 6, kind: input, shape index: {}]
  %s7 = inlined_call_operand.vmem [shape: bf16[128,4], index: 7, kind: input, shape index: {}]
  %s8 = inlined_call_operand.vmem [shape: f32[1,4], index: 8, kind: input, shape index: {}]
  %s9 = inlined_call_operand.hbm [shape: f32[32,32], index: 9, kind: output, shape index: {}]
  %s10 = sld [smem:[#allocation0]]
  $region69: #{tpu_custom_call.1} parent=0
    _
  %s12 = ssub.s32 1, %s10
  %s13 = scalar_select 0, %s12, %s10
  $region1: #{tpu_custom_call.1} parent=0
    #allocation2 [shape = 'u8[16384]{0}', space=vmem, size = 0x4000, scoped, tag = 'output window, operand 0']
    #allocation3 [shape = 's32[2]{0}', space=sflag, size = 0x8, scoped, tag = 'scoped memory for tpu_custom_call.1']
    %14 = vsyncpa [#allocation3], 0
    %s15 = scalar_lea.sflag [#allocation3], 1
    %16 = vsyncpa %s15, 0
    loop: start=0, step=1, limit=4
    $region2: #{tpu_custom_call.1} parent=1 // loop_pre_header
      _
    $region3: #{tpu_custom_call.1} parent=1 // loop_header
      %s18 = sphi 0, %s22
      %p19 = scmp.ge.s32.totalorder %s18, 4
      %s28 = sphi 0, %s30
      %s31 = sphi 0, %s28
      %s32 = sphi 0, %s31
      %s48 = sphi 0, %s32
      %s52 = sphi 0, %s52
      %s54 = sphi 0, %s52
      %s55 = sphi 0, %s54
      %s69 = sphi 0, %s55
      %s73 = sphi 0, %s73
      %s75 = sphi 0, %s73
      %s76 = sphi 0, %s75
      %s90 = sphi 0, %s76
      %s94 = sphi 0, %s94
      %s96 = sphi 0, %s94
      %s97 = sphi 0, %s96
      %s111 = sphi 0, %s97
      %s115 = sphi 0, %s115
      %s117 = sphi 0, %s115
      %s118 = sphi 0, %s117
      %s132 = sphi 0, %s118
      %s136 = sphi 0, %s136
      %s138 = sphi 0, %s136
      %s139 = sphi 0, %s138
      %s153 = sphi 0, %s139
      %s157 = sphi 0, %s157
      %s159 = sphi 0, %s157
      %s160 = sphi 0, %s159
      %s174 = sphi 0, %s160
      %s178 = sphi 0, %s178
      %s180 = sphi 0, %s178
      %s181 = sphi 0, %s180
      %s195 = sphi 0, %s181
      %s199 = sphi 0, %s199
      %s201 = sphi 0, %s199
      %s202 = sphi 0, %s201
      %s216 = sphi 0, %s202
      %s222 = sphi 0, %s224
      %s225 = sphi 0, %s222
      %s226 = sphi 0, %s225
      %s242 = sphi 0, %s226
    $region4: #{tpu_custom_call.1} parent=1 // loop_header_branch
      %21 = sbr.rel (%p19) target = $region8
    $region5: #{tpu_custom_call.1} parent=1 // loop_body
      %s23 = ssub.s32 %s18, 1
      %s24 = ssub.s32 %s18, 2
      %s25 = sadd.s32 %s18, 1
      %s26 = ssub.s32 %s18, %s25
      %p27 = scmp.eq.s32.totalorder %s26, 0
      %s29 = sadd.s32 %s28, 1
      %s30 = scalar_select %p27, %s28, %s29
      %p33 = pneg %p27
      %p34 = scmp.eq.s32.totalorder %s18, 1
      %p35 = por %p33, %p34
      %p36 = scmp.ne.s32.totalorder %s28, %s31
      %p37 = scmp.eq.s32.totalorder %s18, 0
      %p38 = por %p36, %p37
      %p39 = scmp.ne.s32.totalorder %s28, %s31
      %p40 = scmp.eq.s32.totalorder %s23, 1
      %p41 = por %p39, %p40
      %p42 = scmp.ne.s32.totalorder %s31, %s32
      %p43 = scmp.eq.s32.totalorder %s23, 0
      %p44 = por %p42, %p43
      %p45 = scmp.ne.s32.totalorder %s31, %s32
      %p46 = scmp.eq.s32.totalorder %s24, 1
      %p47 = por %p45, %p46
      %p49 = scmp.ne.s32.totalorder %s32, %s48
      %p50 = scmp.eq.s32.totalorder %s24, 0
      %p51 = por %p49, %p50
      %s53 = sadd.s32 %s52, 1
      %p56 = scmp.eq.s32.totalorder %s18, 1
      %p57 = scmp.ne.s32.totalorder %s52, %s54
      %p58 = scmp.eq.s32.totalorder %s18, 0
      %p59 = por %p57, %p58
      %p60 = scmp.ne.s32.totalorder %s52, %s54
      %p61 = scmp.eq.s32.totalorder %s23, 1
      %p62 = por %p60, %p61
      %p63 = scmp.ne.s32.totalorder %s54, %s55
      %p64 = scmp.eq.s32.totalorder %s23, 0
      %p65 = por %p63, %p64
      %p66 = scmp.ne.s32.totalorder %s54, %s55
      %p67 = scmp.eq.s32.totalorder %s24, 1
      %p68 = por %p66, %p67
      %p70 = scmp.ne.s32.totalorder %s55, %s69
      %p71 = scmp.eq.s32.totalorder %s24, 0
      %p72 = por %p70, %p71
      %s74 = sadd.s32 %s73, 1
      %p77 = scmp.eq.s32.totalorder %s18, 1
      %p78 = scmp.ne.s32.totalorder %s73, %s75
      %p79 = scmp.eq.s32.totalorder %s18, 0
      %p80 = por %p78, %p79
      %p81 = scmp.ne.s32.totalorder %s73, %s75
      %p82 = scmp.eq.s32.totalorder %s23, 1
      %p83 = por %p81, %p82
      %p84 = scmp.ne.s32.totalorder %s75, %s76
      %p85 = scmp.eq.s32.totalorder %s23, 0
      %p86 = por %p84, %p85
      %p87 = scmp.ne.s32.totalorder %s75, %s76
      %p88 = scmp.eq.s32.totalorder %s24, 1
      %p89 = por %p87, %p88
      %p91 = scmp.ne.s32.totalorder %s76, %s90
      %p92 = scmp.eq.s32.totalorder %s24, 0
      %p93 = por %p91, %p92
      %s95 = sadd.s32 %s94, 1
      %p98 = scmp.eq.s32.totalorder %s18, 1
      %p99 = scmp.ne.s32.totalorder %s94, %s96
      %p100 = scmp.eq.s32.totalorder %s18, 0
      %p101 = por %p99, %p100
      %p102 = scmp.ne.s32.totalorder %s94, %s96
      %p103 = scmp.eq.s32.totalorder %s23, 1
      %p104 = por %p102, %p103
      %p105 = scmp.ne.s32.totalorder %s96, %s97
      %p106 = scmp.eq.s32.totalorder %s23, 0
      %p107 = por %p105, %p106
      %p108 = scmp.ne.s32.totalorder %s96, %s97
      %p109 = scmp.eq.s32.totalorder %s24, 1
      %p110 = por %p108, %p109
      %p112 = scmp.ne.s32.totalorder %s97, %s111
      %p113 = scmp.eq.s32.totalorder %s24, 0
      %p114 = por %p112, %p113
      %s116 = sadd.s32 %s115, 1
      %p119 = scmp.eq.s32.totalorder %s18, 1
      %p120 = scmp.ne.s32.totalorder %s115, %s117
      %p121 = scmp.eq.s32.totalorder %s18, 0
      %p122 = por %p120, %p121
      %p123 = scmp.ne.s32.totalorder %s115, %s117
      %p124 = scmp.eq.s32.totalorder %s23, 1
      %p125 = por %p123, %p124
      %p126 = scmp.ne.s32.totalorder %s117, %s118
      %p127 = scmp.eq.s32.totalorder %s23, 0
      %p128 = por %p126, %p127
      %p129 = scmp.ne.s32.totalorder %s117, %s118
      %p130 = scmp.eq.s32.totalorder %s24, 1
      %p131 = por %p129, %p130
      %p133 = scmp.ne.s32.totalorder %s118, %s132
      %p134 = scmp.eq.s32.totalorder %s24, 0
      %p135 = por %p133, %p134
      %s137 = sadd.s32 %s136, 1
      %p140 = scmp.eq.s32.totalorder %s18, 1
      %p141 = scmp.ne.s32.totalorder %s136, %s138
      %p142 = scmp.eq.s32.totalorder %s18, 0
      %p143 = por %p141, %p142
      %p144 = scmp.ne.s32.totalorder %s136, %s138
      %p145 = scmp.eq.s32.totalorder %s23, 1
      %p146 = por %p144, %p145
      %p147 = scmp.ne.s32.totalorder %s138, %s139
      %p148 = scmp.eq.s32.totalorder %s23, 0
      %p149 = por %p147, %p148
      %p150 = scmp.ne.s32.totalorder %s138, %s139
      %p151 = scmp.eq.s32.totalorder %s24, 1
      %p152 = por %p150, %p151
      %p154 = scmp.ne.s32.totalorder %s139, %s153
      %p155 = scmp.eq.s32.totalorder %s24, 0
      %p156 = por %p154, %p155
      %s158 = sadd.s32 %s157, 1
      %p161 = scmp.eq.s32.totalorder %s18, 1
      %p162 = scmp.ne.s32.totalorder %s157, %s159
      %p163 = scmp.eq.s32.totalorder %s18, 0
      %p164 = por %p162, %p163
      %p165 = scmp.ne.s32.totalorder %s157, %s159
      %p166 = scmp.eq.s32.totalorder %s23, 1
      %p167 = por %p165, %p166
      %p168 = scmp.ne.s32.totalorder %s159, %s160
      %p169 = scmp.eq.s32.totalorder %s23, 0
      %p170 = por %p168, %p169
      %p171 = scmp.ne.s32.totalorder %s159, %s160
      %p172 = scmp.eq.s32.totalorder %s24, 1
      %p173 = por %p171, %p172
      %p175 = scmp.ne.s32.totalorder %s160, %s174
      %p176 = scmp.eq.s32.totalorder %s24, 0
      %p177 = por %p175, %p176
      %s179 = sadd.s32 %s178, 1
      %p182 = scmp.eq.s32.totalorder %s18, 1
      %p183 = scmp.ne.s32.totalorder %s178, %s180
      %p184 = scmp.eq.s32.totalorder %s18, 0
      %p185 = por %p183, %p184
      %p186 = scmp.ne.s32.totalorder %s178, %s180
      %p187 = scmp.eq.s32.totalorder %s23, 1
      %p188 = por %p186, %p187
      %p189 = scmp.ne.s32.totalorder %s180, %s181
      %p190 = scmp.eq.s32.totalorder %s23, 0
      %p191 = por %p189, %p190
      %p192 = scmp.ne.s32.totalorder %s180, %s181
      %p193 = scmp.eq.s32.totalorder %s24, 1
      %p194 = por %p192, %p193
      %p196 = scmp.ne.s32.totalorder %s181, %s195
      %p197 = scmp.eq.s32.totalorder %s24, 0
      %p198 = por %p196, %p197
      %s200 = sadd.s32 %s199, 1
      %p203 = scmp.eq.s32.totalorder %s18, 1
      %p204 = scmp.ne.s32.totalorder %s199, %s201
      %p205 = scmp.eq.s32.totalorder %s18, 0
      %p206 = por %p204, %p205
      %p207 = scmp.ne.s32.totalorder %s199, %s201
      %p208 = scmp.eq.s32.totalorder %s23, 1
      %p209 = por %p207, %p208
      %p210 = scmp.ne.s32.totalorder %s201, %s202
      %p211 = scmp.eq.s32.totalorder %s23, 0
      %p212 = por %p210, %p211
      %p213 = scmp.ne.s32.totalorder %s201, %s202
      %p214 = scmp.eq.s32.totalorder %s24, 1
      %p215 = por %p213, %p214
      %p217 = scmp.ne.s32.totalorder %s202, %s216
      %p218 = scmp.eq.s32.totalorder %s24, 0
      %p219 = por %p217, %p218
      %s220 = ssub.s32 %s18, %s25
      %p221 = scmp.eq.s32.totalorder %s220, 0
      %s223 = sadd.s32 %s222, 1
      %s224 = scalar_select %p221, %s222, %s223
      %p227 = pneg %p221
      %p228 = scmp.eq.s32.totalorder %s18, 1
      %p229 = por %p227, %p228
      %p230 = scmp.ne.s32.totalorder %s222, %s225
      %p231 = scmp.eq.s32.totalorder %s18, 0
      %p232 = por %p230, %p231
      %p233 = scmp.ne.s32.totalorder %s222, %s225
      %p234 = scmp.eq.s32.totalorder %s23, 1
      %p235 = por %p233, %p234
      %p236 = scmp.ne.s32.totalorder %s225, %s226
      %p237 = scmp.eq.s32.totalorder %s23, 0
      %p238 = por %p236, %p237
      %p239 = scmp.ne.s32.totalorder %s225, %s226
      %p240 = scmp.eq.s32.totalorder %s24, 1
      %p241 = por %p239, %p240
      %p243 = scmp.ne.s32.totalorder %s226, %s242
      %p244 = scmp.eq.s32.totalorder %s24, 0
      %p245 = por %p243, %p244
      %p246 = scmp.le.s32.totalorder 1, %s18
      %p247 = scmp.lt.s32.totalorder %s18, 3
      %p248 = pnand %p246, %p247
      %p249 = pneg %p248
      // Predicated region
      $region9: #{tpu_custom_call.1} parent=5 // pred_check
        _
      $region10: #{tpu_custom_call.1} parent=5 // pred_check_branch
        %251 = sbr.rel (%p248) target = $region12
      $region11: #{tpu_custom_call.1} parent=5 // pred_region
        %s252 = ssub.s32 %s18, 1
        // Predicated region
        $region13: #{tpu_custom_call.1} parent=11 // pred_check
          %p253 = pneg %p65
        $region14: #{tpu_custom_call.1} parent=11 // pred_check_branch
          %255 = sbr.rel (%p253) target = $region16
        $region15: #{tpu_custom_call.1} parent=11 // pred_region
          _
        $region16: #{tpu_custom_call.1} parent=11 // pred_fallthru
          _
        // Predicated region
        $region17: #{tpu_custom_call.1} parent=11 // pred_check
          %p256 = pneg %p86
        $region18: #{tpu_custom_call.1} parent=11 // pred_check_branch
          %258 = sbr.rel (%p256) target = $region20
        $region19: #{tpu_custom_call.1} parent=11 // pred_region
          _
        $region20: #{tpu_custom_call.1} parent=11 // pred_fallthru
          _
        // Predicated region
        $region21: #{tpu_custom_call.1} parent=11 // pred_check
          %p259 = pneg %p107
        $region22: #{tpu_custom_call.1} parent=11 // pred_check_branch
          %261 = sbr.rel (%p259) target = $region24
        $region23: #{tpu_custom_call.1} parent=11 // pred_region
          _
        $region24: #{tpu_custom_call.1} parent=11 // pred_fallthru
          _
        // Predicated region
        $region25: #{tpu_custom_call.1} parent=11 // pred_check
          %p262 = pneg %p128
        $region26: #{tpu_custom_call.1} parent=11 // pred_check_branch
          %264 = sbr.rel (%p262) target = $region28
        $region27: #{tpu_custom_call.1} parent=11 // pred_region
          _
        $region28: #{tpu_custom_call.1} parent=11 // pred_fallthru
          _
        // Predicated region
        $region29: #{tpu_custom_call.1} parent=11 // pred_check
          %p265 = pneg %p149
        $region30: #{tpu_custom_call.1} parent=11 // pred_check_branch
          %267 = sbr.rel (%p265) target = $region32
        $region31: #{tpu_custom_call.1} parent=11 // pred_region
          _
        $region32: #{tpu_custom_call.1} parent=11 // pred_fallthru
          _
        // Predicated region
        $region33: #{tpu_custom_call.1} parent=11 // pred_check
          %p268 = pneg %p170
        $region34: #{tpu_custom_call.1} parent=11 // pred_check_branch
          %270 = sbr.rel (%p268) target = $region36
        $region35: #{tpu_custom_call.1} parent=11 // pred_region
          _
        $region36: #{tpu_custom_call.1} parent=11 // pred_fallthru
          _
        // Predicated region
        $region37: #{tpu_custom_call.1} parent=11 // pred_check
          %p271 = pneg %p191
        $region38: #{tpu_custom_call.1} parent=11 // pred_check_branch
          %273 = sbr.rel (%p271) target = $region40
        $region39: #{tpu_custom_call.1} parent=11 // pred_region
          _
        $region40: #{tpu_custom_call.1} parent=11 // pred_fallthru
          _
        // Predicated region
        $region41: #{tpu_custom_call.1} parent=11 // pred_check
          %p274 = pneg %p212
        $region42: #{tpu_custom_call.1} parent=11 // pred_check_branch
          %276 = sbr.rel (%p274) target = $region44
        $region43: #{tpu_custom_call.1} parent=11 // pred_region
          _
        $region44: #{tpu_custom_call.1} parent=11 // pred_fallthru
          _
      $region12: #{tpu_custom_call.1} parent=5 // pred_fallthru
        _
      %p277 = scmp.lt.s32.totalorder %s18, 2
      // Predicated region
      $region45: #{tpu_custom_call.1} parent=5 // pred_check
        %p278 = pneg %p277
      $region46: #{tpu_custom_call.1} parent=5 // pred_check_branch
        %280 = sbr.rel (%p278) target = $region48
      $region47: #{tpu_custom_call.1} parent=5 // pred_region
        // Predicated region
        $region49: #{tpu_custom_call.1} parent=47 // pred_check
          %p281 = pneg %p38
        $region50: #{tpu_custom_call.1} parent=47 // pred_check_branch
          %283 = sbr.rel (%p281) target = $region52
        $region51: #{tpu_custom_call.1} parent=47 // pred_region
          %p284 = scmp.lt.s32.totalorder %s18, 1
          %s285 = scalar_select %p284, %s18, 1
          %s286 = smul.addr %s285, 8
          %s287 = smul.addr %s286, 4
          %s288 = scalar_lea.vmem %s0, %s287
        $region52: #{tpu_custom_call.1} parent=47 // pred_fallthru
          _
      $region48: #{tpu_custom_call.1} parent=5 // pred_fallthru
        _
      %p289 = scmp.le.s32.totalorder 1, %s18
      %p290 = scmp.lt.s32.totalorder %s18, 3
      %p291 = pnand %p289, %p290
      %p292 = pneg %p291
      // Predicated region
      $region53: #{tpu_custom_call.1} parent=5 // pred_check
        _
      $region54: #{tpu_custom_call.1} parent=5 // pred_check_branch
        %294 = sbr.rel (%p291) target = $region56
      $region55: #{tpu_custom_call.1} parent=5 // pred_region
        %s295 = ssub.s32 %s18, 1
        %p296 = scmp.lt.s32.totalorder %s23, 1
        %s297 = scalar_select %p296, %s23, 1
        %s298 = smul.addr %s297, 8
        %s299 = smul.addr %s298, 4
        %s300 = scalar_lea.vmem %s0, %s299
        %p301 = pneg %p44
        %p302 = pneg %p41
        %p303 = pneg %p65
        %p304 = pneg %p62
        %p305 = pneg %p86
        %p306 = pneg %p83
        %p307 = pneg %p107
        %p308 = pneg %p104
        %p309 = pneg %p128
        %p310 = pneg %p125
        %p311 = pneg %p149
        %p312 = pneg %p146
        %p313 = pneg %p170
        %p314 = pneg %p167
        %p315 = pneg %p191
        %p316 = pneg %p188
        %p317 = pneg %p212
        %p318 = pneg %p209
        %p319 = pneg %p238
        %p320 = pneg %p235
        %s321 = sand.u32 %s225, 1
        %s322 = scalar_lea.sflag [#allocation3], %s321
        %s323 = sand.u32 %s225, 1
        %s324 = smul.addr %s323, 16
        %s325 = scalar_lea.vmem [#allocation2], %s324
        %p326 = scmp.lt.s32.totalorder %s23, 1
        %s327 = scalar_select %p326, %s23, 1
        %s328 = smul.addr %s327, 8
        %s329 = smul.addr %s328, 4
        %s330 = scalar_lea.vmem %s0, %s329
        %s331 = smul.u32 2, %s23
        %v333 = vld [vmem:[%s330] sm:$0xf]
        %v334 = vld [vmem:[%s330 + $0x4] sm:$0xf]
        %v335 = vld [vmem:[%s330 + $0x8] sm:$0xf]
        %v336 = vld [vmem:[%s330 + $0xc] sm:$0xf]
        %v337 = vld [vmem:[%s330 + $0x10] sm:$0xf]
        %v338 = vld [vmem:[%s330 + $0x14] sm:$0xf]
        %v339 = vld [vmem:[%s330 + $0x18] sm:$0xf]
        %v340 = vld [vmem:[%s330 + $0x1c] sm:$0xf]
        %v341 = vunpack.c.l.bf16 %v333
        %v342 = vunpack.c.l.bf16 %v334
        %v343 = vunpack.c.l.bf16 %v335
        %v344 = vunpack.c.l.bf16 %v336
        %v345 = vunpack.c.l.bf16 %v337
        %v346 = vunpack.c.l.bf16 %v338
        %v347 = vunpack.c.l.bf16 %v339
        %v348 = vunpack.c.l.bf16 %v340
        %v349 = vld [vmem:[%s2] sm:$0xff]
        %v350 = vld [vmem:[%s1] sm:$0xff]
        %v351 = vld [vmem:[%s1 + $0x8] sm:$0xff]
        %v352 = vld [vmem:[%s1 + $0x10] sm:$0xff]
        %v353 = vld [vmem:[%s1 + $0x18] sm:$0xff]
        %v354 = vld [vmem:[%s1 + $0x20] sm:$0xff]
        %v355 = vld [vmem:[%s1 + $0x28] sm:$0xff]
        %v356 = vld [vmem:[%s1 + $0x30] sm:$0xff]
        %v357 = vld [vmem:[%s1 + $0x38] sm:$0xff]
        %359 = vset.pattern.permute.xlu0 32
        %360 = vperm.xlu0 %359, %v341
        %v361 = vpop.permute.xlu0 %360
        %364 = vset.pattern.permute.xlu0 32
        %365 = vperm.xlu0 %364, %v342
        %v366 = vpop.permute.xlu0 %365
        %369 = vset.pattern.permute.xlu0 32
        %370 = vperm.xlu0 %369, %v343
        %v371 = vpop.permute.xlu0 %370
        %374 = vset.pattern.permute.xlu0 32
        %375 = vperm.xlu0 %374, %v344
        %v376 = vpop.permute.xlu0 %375
        %379 = vset.pattern.permute.xlu0 32
        %380 = vperm.xlu0 %379, %v345
        %v381 = vpop.permute.xlu0 %380
        %384 = vset.pattern.permute.xlu0 32
        %385 = vperm.xlu0 %384, %v346
        %v386 = vpop.permute.xlu0 %385
        %389 = vset.pattern.permute.xlu0 32
        %390 = vperm.xlu0 %389, %v347
        %v391 = vpop.permute.xlu0 %390
        %394 = vset.pattern.permute.xlu0 32
        %395 = vperm.xlu0 %394, %v348
        %v396 = vpop.permute.xlu0 %395
        %v399 = vlaneseq
        %v400 = vshrl.u32 %v399, 7
        %v401 = vsub.s32 0, %v400
        %v402 = vrot.slane %v349, %v401
        %v403 = vlaneseq
        %v404 = vshrl.u32 %v403, 7
        %v405 = vsub.s32 2, %v404
        %v406 = vrot.slane %v349, %v405
        %v407 = vlaneseq
        %v408 = vshrl.u32 %v407, 7
        %v409 = vsub.s32 4, %v408
        %v410 = vrot.slane %v349, %v409
        %v411 = vlaneseq
        %v412 = vshrl.u32 %v411, 7
        %v413 = vsub.s32 6, %v412
        %v414 = vrot.slane %v349, %v413
        %v419 = vlaneseq
        %v420 = vshrl.u32 %v419, 7
        %v421 = vsub.s32 0, %v420
        %v422 = vrot.slane %v402, %v421
        %v423 = vlaneseq
        %v424 = vshrl.u32 %v423, 7
        %v425 = vsub.s32 0, %v424
        %v426 = vrot.slane %v406, %v425
        %v427 = vlaneseq
        %v428 = vshrl.u32 %v427, 7
        %v429 = vsub.s32 0, %v428
        %v430 = vrot.slane %v410, %v429
        %v431 = vlaneseq
        %v432 = vshrl.u32 %v431, 7
        %v433 = vsub.s32 0, %v432
        %v434 = vrot.slane %v414, %v433
        %v435 = vmul.f32 %v361, %v422
        %v436 = vmul.f32 %v361, %v426
        %v437 = vmul.f32 %v361, %v430
        %v438 = vmul.f32 %v361, %v434
        %v439 = vmul.f32 %v366, %v422
        %v440 = vmul.f32 %v366, %v426
        %v441 = vmul.f32 %v366, %v430
        %v442 = vmul.f32 %v366, %v434
        %v443 = vmul.f32 %v371, %v422
        %v444 = vmul.f32 %v371, %v426
        %v445 = vmul.f32 %v371, %v430
        %v446 = vmul.f32 %v371, %v434
        %v447 = vmul.f32 %v376, %v422
        %v448 = vmul.f32 %v376, %v426
        %v449 = vmul.f32 %v376, %v430
        %v450 = vmul.f32 %v376, %v434
        %v451 = vmul.f32 %v381, %v422
        %v452 = vmul.f32 %v381, %v426
        %v453 = vmul.f32 %v381, %v430
        %v454 = vmul.f32 %v381, %v434
        %v455 = vmul.f32 %v386, %v422
        %v456 = vmul.f32 %v386, %v426
        %v457 = vmul.f32 %v386, %v430
        %v458 = vmul.f32 %v386, %v434
        %v459 = vmul.f32 %v391, %v422
        %v460 = vmul.f32 %v391, %v426
        %v461 = vmul.f32 %v391, %v430
        %v462 = vmul.f32 %v391, %v434
        %v463 = vmul.f32 %v396, %v422
        %v464 = vmul.f32 %v396, %v426
        %v465 = vmul.f32 %v396, %v430
        %v466 = vmul.f32 %v396, %v434
        %v475 = vunpack.c.l.b16 %v333
        %v476 = vunpack.c.l.b16 %v334
        %v477 = vunpack.c.l.b16 %v335
        %v478 = vunpack.c.l.b16 %v336
        %v479 = vunpack.c.l.b16 %v337
        %v480 = vunpack.c.l.b16 %v338
        %v481 = vunpack.c.l.b16 %v339
        %v482 = vunpack.c.l.b16 %v340
        %v483 = vpack.c.b16 %v476, %v475
        %v484 = vpack.c.b16 %v478, %v477
        %v485 = vpack.c.b16 %v480, %v479
        %v486 = vpack.c.b16 %v482, %v481
        %v495 = vunpack.c.l.b16 %v350
        %v496 = vunpack.c.h.b16 %v350
        %v497 = vunpack.c.l.b16 %v351
        %v498 = vunpack.c.h.b16 %v351
        %v499 = vunpack.c.l.b16 %v352
        %v500 = vunpack.c.h.b16 %v352
        %v501 = vunpack.c.l.b16 %v353
        %v502 = vunpack.c.h.b16 %v353
        %v503 = vunpack.c.l.b16 %v354
        %v504 = vunpack.c.h.b16 %v354
        %v505 = vunpack.c.l.b16 %v355
        %v506 = vunpack.c.h.b16 %v355
        %v507 = vunpack.c.l.b16 %v356
        %v508 = vunpack.c.h.b16 %v356
        %v509 = vunpack.c.l.b16 %v357
        %v510 = vunpack.c.h.b16 %v357
        %v511 = vpack.c.b16 %v499, %v495
        %v512 = vpack.c.b16 %v500, %v496
        %v513 = vpack.c.b16 %v501, %v497
        %v514 = vpack.c.b16 %v502, %v498
        %v515 = vpack.c.b16 %v507, %v503
        %v516 = vpack.c.b16 %v508, %v504
        %v517 = vpack.c.b16 %v509, %v505
        %v518 = vpack.c.b16 %v510, %v506
        %vm527 = vcmask 261120
        %v529 = vsel %vm527, %v483, 0
        %v532 = vsel %vm527, %v484, 0
        %v535 = vsel %vm527, %v485, 0
        %v538 = vsel %vm527, %v486, 0
        %540 = vmatprep.subr.bf16.mxu0 %v512
        %541 = vmatpush1.bf16.msra.mxu0 %v511
        %542 = vmatprep.subr.bf16.mxu0 %v516
        %543 = vmatpush1.bf16.msra.mxu0 %v515
        %544 = vmatprep.subr.bf16.mxu0 0
        %545 = vmatpush1.bf16.msra.mxu0 0
        %546 = vmatprep.subr.bf16.mxu0 0
        %547 = vmatpush1.bf16.msra.mxu0 0
        %548 = vmatprep.subr.bf16.mxu0 0
        %549 = vmatpush1.bf16.msra.mxu0 0
        %550 = vmatprep.subr.bf16.mxu0 0
        %551 = vmatpush1.bf16.msra.mxu0 0
        %552 = vmatprep.subr.bf16.mxu0 0
        %553 = vmatpush1.bf16.msra.mxu0 0
        %554 = vmatprep.subr.bf16.mxu0 0
        %555 = vmatpush1.bf16.msra.mxu0 0
        %556 = vmatprep.subr.bf16.mxu0 0
        %557 = vmatpush1.bf16.msra.mxu0 0
        %558 = vmatprep.subr.bf16.mxu0 0
        %559 = vmatpush1.bf16.msra.mxu0 0
        %560 = vmatprep.subr.bf16.mxu0 0
        %561 = vmatpush1.bf16.msra.mxu0 0
        %562 = vmatprep.subr.bf16.mxu0 0
        %563 = vmatpush1.bf16.msra.mxu0 0
        %564 = vmatprep.subr.bf16.mxu0 0
        %565 = vmatpush1.bf16.msra.mxu0 0
        %566 = vmatprep.subr.bf16.mxu0 0
        %567 = vmatpush1.bf16.msra.mxu0 0
        %568 = vmatprep.subr.bf16.mxu0 0
        %569 = vmatpush1.bf16.msra.mxu0 0
        %570 = vmatprep.subr.bf16.mxu0 0
        %571 = vmatpush1.bf16.msra.mxu0 0
        %572 = vmatprep.mubr.bf16.mxu0 0
        %573 = vmatmul.mubr.bf16.gmra.mrb[0].mxu0 %v529
        %v574 = vpop.f32.mrb[0].mxu0
        %v575 = vadd.f32 %v435, %v574
        %v576 = vpop.f32.mrb[0].mxu0
        %v577 = vadd.f32 %v436, %v576
        %v578 = vpop.f32.mrb[0].mxu0
        %v579 = vadd.f32 %v439, %v578
        %v580 = vpop.f32.mrb[0].mxu0
        %v581 = vadd.f32 %v440, %v580
        %582 = vmatprep.mubr.bf16.mxu0 0
        %583 = vmatmul.mubr.bf16.gmra.mrb[0].mxu0 %v532
        %v584 = vpop.f32.mrb[0].mxu0
        %v585 = vadd.f32 %v443, %v584
        %v586 = vpop.f32.mrb[0].mxu0
        %v587 = vadd.f32 %v444, %v586
        %v588 = vpop.f32.mrb[0].mxu0
        %v589 = vadd.f32 %v447, %v588
        %v590 = vpop.f32.mrb[0].mxu0
        %v591 = vadd.f32 %v448, %v590
        %592 = vmatprep.mubr.bf16.mxu0 0
        %593 = vmatmul.mubr.bf16.gmra.mrb[0].mxu0 %v535
        %v594 = vpop.f32.mrb[0].mxu0
        %v595 = vadd.f32 %v451, %v594
        %v596 = vpop.f32.mrb[0].mxu0
        %v597 = vadd.f32 %v452, %v596
        %v598 = vpop.f32.mrb[0].mxu0
        %v599 = vadd.f32 %v455, %v598
        %v600 = vpop.f32.mrb[0].mxu0
        %v601 = vadd.f32 %v456, %v600
        %602 = vmatprep.mubr.bf16.mxu0 0
        %603 = vmatmul.mubr.bf16.gmra.mrb[0].mxu0 %v538
        %v604 = vpop.f32.mrb[0].mxu0
        %v605 = vadd.f32 %v459, %v604
        %v606 = vpop.f32.mrb[0].mxu0
        %v607 = vadd.f32 %v460, %v606
        %v608 = vpop.f32.mrb[0].mxu0
        %v609 = vadd.f32 %v463, %v608
        %v610 = vpop.f32.mrb[0].mxu0
        %v611 = vadd.f32 %v464, %v610
        %612 = vdwg.mxu0
        %613 = vmatprep.subr.bf16.mxu0 %v514
        %614 = vmatpush1.bf16.msra.mxu0 %v513
        %615 = vmatprep.subr.bf16.mxu0 %v518
        %616 = vmatpush1.bf16.msra.mxu0 %v517
        %617 = vmatprep.subr.bf16.mxu0 0
        %618 = vmatpush1.bf16.msra.mxu0 0
        %619 = vmatprep.subr.bf16.mxu0 0
        %620 = vmatpush1.bf16.msra.mxu0 0
        %621 = vmatprep.subr.bf16.mxu0 0
        %622 = vmatpush1.bf16.msra.mxu0 0
        %623 = vmatprep.subr.bf16.mxu0 0
        %624 = vmatpush1.bf16.msra.mxu0 0
        %625 = vmatprep.subr.bf16.mxu0 0
        %626 = vmatpush1.bf16.msra.mxu0 0
        %627 = vmatprep.subr.bf16.mxu0 0
        %628 = vmatpush1.bf16.msra.mxu0 0
        %629 = vmatprep.subr.bf16.mxu0 0
        %630 = vmatpush1.bf16.msra.mxu0 0
        %631 = vmatprep.subr.bf16.mxu0 0
        %632 = vmatpush1.bf16.msra.mxu0 0
        %633 = vmatprep.subr.bf16.mxu0 0
        %634 = vmatpush1.bf16.msra.mxu0 0
        %635 = vmatprep.subr.bf16.mxu0 0
        %636 = vmatpush1.bf16.msra.mxu0 0
        %637 = vmatprep.subr.bf16.mxu0 0
        %638 = vmatpush1.bf16.msra.mxu0 0
        %639 = vmatprep.subr.bf16.mxu0 0
        %640 = vmatpush1.bf16.msra.mxu0 0
        %641 = vmatprep.subr.bf16.mxu0 0
        %642 = vmatpush1.bf16.msra.mxu0 0
        %643 = vmatprep.subr.bf16.mxu0 0
        %644 = vmatpush1.bf16.msra.mxu0 0
        %645 = vmatprep.mubr.bf16.mxu0 0
        %646 = vmatmul.mubr.bf16.gmra.mrb[0].mxu0 %v529
        %v647 = vpop.f32.mrb[0].mxu0
        %v648 = vadd.f32 %v437, %v647
        %v649 = vpop.f32.mrb[0].mxu0
        %v650 = vadd.f32 %v438, %v649
        %v651 = vpop.f32.mrb[0].mxu0
        %v652 = vadd.f32 %v441, %v651
        %v653 = vpop.f32.mrb[0].mxu0
        %v654 = vadd.f32 %v442, %v653
        %655 = vmatprep.mubr.bf16.mxu0 0
        %656 = vmatmul.mubr.bf16.gmra.mrb[0].mxu0 %v532
        %v657 = vpop.f32.mrb[0].mxu0
        %v658 = vadd.f32 %v445, %v657
        %v659 = vpop.f32.mrb[0].mxu0
        %v660 = vadd.f32 %v446, %v659
        %v661 = vpop.f32.mrb[0].mxu0
        %v662 = vadd.f32 %v449, %v661
        %v663 = vpop.f32.mrb[0].mxu0
        %v664 = vadd.f32 %v450, %v663
        %665 = vmatprep.mubr.bf16.mxu0 0
        %666 = vmatmul.mubr.bf16.gmra.mrb[0].mxu0 %v535
        %v667 = vpop.f32.mrb[0].mxu0
        %v668 = vadd.f32 %v453, %v667
        %v669 = vpop.f32.mrb[0].mxu0
        %v670 = vadd.f32 %v454, %v669
        %v671 = vpop.f32.mrb[0].mxu0
        %v672 = vadd.f32 %v457, %v671
        %v673 = vpop.f32.mrb[0].mxu0
        %v674 = vadd.f32 %v458, %v673
        %675 = vmatprep.mubr.bf16.mxu0 0
        %676 = vmatmul.mubr.bf16.gmra.mrb[0].mxu0 %v538
        %v677 = vpop.f32.mrb[0].mxu0
        %v678 = vadd.f32 %v461, %v677
        %v679 = vpop.f32.mrb[0].mxu0
        %v680 = vadd.f32 %v462, %v679
        %v681 = vpop.f32.mrb[0].mxu0
        %v682 = vadd.f32 %v465, %v681
        %v683 = vpop.f32.mrb[0].mxu0
        %v684 = vadd.f32 %v466, %v683
        %685 = vdwg.mxu0
        %686 = vset.pattern.permute.xlu0 33
        %687 = vperm.xlu0 %686, %v341
        %v688 = vpop.permute.xlu0 %687
        %690 = vset.pattern.permute.xlu0 33
        %691 = vperm.xlu0 %690, %v342
        %v692 = vpop.permute.xlu0 %691
        %694 = vset.pattern.permute.xlu0 33
        %695 = vperm.xlu0 %694, %v343
        %v696 = vpop.permute.xlu0 %695
        %698 = vset.pattern.permute.xlu0 33
        %699 = vperm.xlu0 %698, %v344
        %v700 = vpop.permute.xlu0 %699
        %702 = vset.pattern.permute.xlu0 33
        %703 = vperm.xlu0 %702, %v345
        %v704 = vpop.permute.xlu0 %703
        %706 = vset.pattern.permute.xlu0 33
        %707 = vperm.xlu0 %706, %v346
        %v708 = vpop.permute.xlu0 %707
        %710 = vset.pattern.permute.xlu0 33
        %711 = vperm.xlu0 %710, %v347
        %v712 = vpop.permute.xlu0 %711
        %714 = vset.pattern.permute.xlu0 33
        %715 = vperm.xlu0 %714, %v348
        %v716 = vpop.permute.xlu0 %715
        %v718 = vlaneseq
        %v719 = vshrl.u32 %v718, 7
        %v720 = vsub.s32 1, %v719
        %v721 = vrot.slane %v349, %v720
        %v722 = vlaneseq
        %v723 = vshrl.u32 %v722, 7
        %v724 = vsub.s32 3, %v723
        %v725 = vrot.slane %v349, %v724
        %v726 = vlaneseq
        %v727 = vshrl.u32 %v726, 7
        %v728 = vsub.s32 5, %v727
        %v729 = vrot.slane %v349, %v728
        %v730 = vlaneseq
        %v731 = vshrl.u32 %v730, 7
        %v732 = vsub.s32 7, %v731
        %v733 = vrot.slane %v349, %v732
        %v738 = vlaneseq
        %v739 = vshrl.u32 %v738, 7
        %v740 = vsub.s32 1, %v739
        %v741 = vrot.slane %v721, %v740
        %v742 = vlaneseq
        %v743 = vshrl.u32 %v742, 7
        %v744 = vsub.s32 1, %v743
        %v745 = vrot.slane %v725, %v744
        %v746 = vlaneseq
        %v747 = vshrl.u32 %v746, 7
        %v748 = vsub.s32 1, %v747
        %v749 = vrot.slane %v729, %v748
        %v750 = vlaneseq
        %v751 = vshrl.u32 %v750, 7
        %v752 = vsub.s32 1, %v751
        %v753 = vrot.slane %v733, %v752
        %v754 = vmul.f32 %v688, %v741
        %v755 = vmul.f32 %v688, %v745
        %v756 = vmul.f32 %v688, %v749
        %v757 = vmul.f32 %v688, %v753
        %v758 = vmul.f32 %v692, %v741
        %v759 = vmul.f32 %v692, %v745
        %v760 = vmul.f32 %v692, %v749
        %v761 = vmul.f32 %v692, %v753
        %v762 = vmul.f32 %v696, %v741
        %v763 = vmul.f32 %v696, %v745
        %v764 = vmul.f32 %v696, %v749
        %v765 = vmul.f32 %v696, %v753
        %v766 = vmul.f32 %v700, %v741
        %v767 = vmul.f32 %v700, %v745
        %v768 = vmul.f32 %v700, %v749
        %v769 = vmul.f32 %v700, %v753
        %v770 = vmul.f32 %v704, %v741
        %v771 = vmul.f32 %v704, %v745
        %v772 = vmul.f32 %v704, %v749
        %v773 = vmul.f32 %v704, %v753
        %v774 = vmul.f32 %v708, %v741
        %v775 = vmul.f32 %v708, %v745
        %v776 = vmul.f32 %v708, %v749
        %v777 = vmul.f32 %v708, %v753
        %v778 = vmul.f32 %v712, %v741
        %v779 = vmul.f32 %v712, %v745
        %v780 = vmul.f32 %v712, %v749
        %v781 = vmul.f32 %v712, %v753
        %v782 = vmul.f32 %v716, %v741
        %v783 = vmul.f32 %v716, %v745
        %v784 = vmul.f32 %v716, %v749
        %v785 = vmul.f32 %v716, %v753
        %v786 = vadd.f32 %v575, %v754
        %v787 = vadd.f32 %v577, %v755
        %v788 = vadd.f32 %v648, %v756
        %v789 = vadd.f32 %v650, %v757
        %v790 = vadd.f32 %v579, %v758
        %v791 = vadd.f32 %v581, %v759
        %v792 = vadd.f32 %v652, %v760
        %v793 = vadd.f32 %v654, %v761
        %v794 = vadd.f32 %v585, %v762
        %v795 = vadd.f32 %v587, %v763
        %v796 = vadd.f32 %v658, %v764
        %v797 = vadd.f32 %v660, %v765
        %v798 = vadd.f32 %v589, %v766
        %v799 = vadd.f32 %v591, %v767
        %v800 = vadd.f32 %v662, %v768
        %v801 = vadd.f32 %v664, %v769
        %v802 = vadd.f32 %v595, %v770
        %v803 = vadd.f32 %v597, %v771
        %v804 = vadd.f32 %v668, %v772
        %v805 = vadd.f32 %v670, %v773
        %v806 = vadd.f32 %v599, %v774
        %v807 = vadd.f32 %v601, %v775
        %v808 = vadd.f32 %v672, %v776
        %v809 = vadd.f32 %v674, %v777
        %v810 = vadd.f32 %v605, %v778
        %v811 = vadd.f32 %v607, %v779
        %v812 = vadd.f32 %v678, %v780
        %v813 = vadd.f32 %v680, %v781
        %v814 = vadd.f32 %v609, %v782
        %v815 = vadd.f32 %v611, %v783
        %v816 = vadd.f32 %v682, %v784
        %v817 = vadd.f32 %v684, %v785
        %v818 = vld [vmem:[%s3] sm:$0xf]
        %819 = vset.pattern.permute.xlu0 34
        %820 = vperm.xlu0 %819, %v341
        %v821 = vpop.permute.xlu0 %820
        %823 = vset.pattern.permute.xlu0 34
        %824 = vperm.xlu0 %823, %v342
        %v825 = vpop.permute.xlu0 %824
        %827 = vset.pattern.permute.xlu0 34
        %828 = vperm.xlu0 %827, %v343
        %v829 = vpop.permute.xlu0 %828
        %831 = vset.pattern.permute.xlu0 34
        %832 = vperm.xlu0 %831, %v344
        %v833 = vpop.permute.xlu0 %832
        %835 = vset.pattern.permute.xlu0 34
        %836 = vperm.xlu0 %835, %v345
        %v837 = vpop.permute.xlu0 %836
        %839 = vset.pattern.permute.xlu0 34
        %840 = vperm.xlu0 %839, %v346
        %v841 = vpop.permute.xlu0 %840
        %843 = vset.pattern.permute.xlu0 34
        %844 = vperm.xlu0 %843, %v347
        %v845 = vpop.permute.xlu0 %844
        %847 = vset.pattern.permute.xlu0 34
        %848 = vperm.xlu0 %847, %v348
        %v849 = vpop.permute.xlu0 %848
        %v852 = vlaneseq
        %v853 = vshrl.u32 %v852, 7
        %v854 = vsub.s32 0, %v853
        %v855 = vrot.slane %v818, %v854
        %v856 = vlaneseq
        %v857 = vshrl.u32 %v856, 7
        %v858 = vsub.s32 1, %v857
        %v859 = vrot.slane %v818, %v858
        %v860 = vlaneseq
        %v861 = vshrl.u32 %v860, 7
        %v862 = vsub.s32 2, %v861
        %v863 = vrot.slane %v818, %v862
        %v864 = vlaneseq
        %v865 = vshrl.u32 %v864, 7
        %v866 = vsub.s32 3, %v865
        %v867 = vrot.slane %v818, %v866
        %v872 = vmul.f32 %v821, %v855
        %v873 = vmul.f32 %v821, %v859
        %v874 = vmul.f32 %v821, %v863
        %v875 = vmul.f32 %v821, %v867
        %v876 = vmul.f32 %v825, %v855
        %v877 = vmul.f32 %v825, %v859
        %v878 = vmul.f32 %v825, %v863
        %v879 = vmul.f32 %v825, %v867
        %v880 = vmul.f32 %v829, %v855
        %v881 = vmul.f32 %v829, %v859
        %v882 = vmul.f32 %v829, %v863
        %v883 = vmul.f32 %v829, %v867
        %v884 = vmul.f32 %v833, %v855
        %v885 = vmul.f32 %v833, %v859
        %v886 = vmul.f32 %v833, %v863
        %v887 = vmul.f32 %v833, %v867
        %v888 = vmul.f32 %v837, %v855
        %v889 = vmul.f32 %v837, %v859
        %v890 = vmul.f32 %v837, %v863
        %v891 = vmul.f32 %v837, %v867
        %v892 = vmul.f32 %v841, %v855
        %v893 = vmul.f32 %v841, %v859
        %v894 = vmul.f32 %v841, %v863
        %v895 = vmul.f32 %v841, %v867
        %v896 = vmul.f32 %v845, %v855
        %v897 = vmul.f32 %v845, %v859
        %v898 = vmul.f32 %v845, %v863
        %v899 = vmul.f32 %v845, %v867
        %v900 = vmul.f32 %v849, %v855
        %v901 = vmul.f32 %v849, %v859
        %v902 = vmul.f32 %v849, %v863
        %v903 = vmul.f32 %v849, %v867
        %v904 = vadd.f32 %v786, %v872
        %v905 = vadd.f32 %v787, %v873
        %v906 = vadd.f32 %v788, %v874
        %v907 = vadd.f32 %v789, %v875
        %v908 = vadd.f32 %v790, %v876
        %v909 = vadd.f32 %v791, %v877
        %v910 = vadd.f32 %v792, %v878
        %v911 = vadd.f32 %v793, %v879
        %v912 = vadd.f32 %v794, %v880
        %v913 = vadd.f32 %v795, %v881
        %v914 = vadd.f32 %v796, %v882
        %v915 = vadd.f32 %v797, %v883
        %v916 = vadd.f32 %v798, %v884
        %v917 = vadd.f32 %v799, %v885
        %v918 = vadd.f32 %v800, %v886
        %v919 = vadd.f32 %v801, %v887
        %v920 = vadd.f32 %v802, %v888
        %v921 = vadd.f32 %v803, %v889
        %v922 = vadd.f32 %v804, %v890
        %v923 = vadd.f32 %v805, %v891
        %v924 = vadd.f32 %v806, %v892
        %v925 = vadd.f32 %v807, %v893
        %v926 = vadd.f32 %v808, %v894
        %v927 = vadd.f32 %v809, %v895
        %v928 = vadd.f32 %v810, %v896
        %v929 = vadd.f32 %v811, %v897
        %v930 = vadd.f32 %v812, %v898
        %v931 = vadd.f32 %v813, %v899
        %v932 = vadd.f32 %v814, %v900
        %v933 = vadd.f32 %v815, %v901
        %v934 = vadd.f32 %v816, %v902
        %v935 = vadd.f32 %v817, %v903
        %v936 = vld [vmem:[%s4] sm:$0xf]
        %v938 = vlaneseq
        %v939 = vshrl.u32 %v938, 7
        %v940 = vsub.s32 0, %v939
        %v941 = vrot.slane %v936, %v940
        %v942 = vlaneseq
        %v943 = vshrl.u32 %v942, 7
        %v944 = vsub.s32 1, %v943
        %v945 = vrot.slane %v936, %v944
        %v946 = vlaneseq
        %v947 = vshrl.u32 %v946, 7
        %v948 = vsub.s32 2, %v947
        %v949 = vrot.slane %v936, %v948
        %v950 = vlaneseq
        %v951 = vshrl.u32 %v950, 7
        %v952 = vsub.s32 3, %v951
        %v953 = vrot.slane %v936, %v952
        %v958 = vadd.f32 %v904, %v941
        %v959 = vadd.f32 %v905, %v945
        %v960 = vadd.f32 %v906, %v949
        %v961 = vadd.f32 %v907, %v953
        %v962 = vadd.f32 %v908, %v941
        %v963 = vadd.f32 %v909, %v945
        %v964 = vadd.f32 %v910, %v949
        %v965 = vadd.f32 %v911, %v953
        %v966 = vadd.f32 %v912, %v941
        %v967 = vadd.f32 %v913, %v945
        %v968 = vadd.f32 %v914, %v949
        %v969 = vadd.f32 %v915, %v953
        %v970 = vadd.f32 %v916, %v941
        %v971 = vadd.f32 %v917, %v945
        %v972 = vadd.f32 %v918, %v949
        %v973 = vadd.f32 %v919, %v953
        %v974 = vadd.f32 %v920, %v941
        %v975 = vadd.f32 %v921, %v945
        %v976 = vadd.f32 %v922, %v949
        %v977 = vadd.f32 %v923, %v953
        %v978 = vadd.f32 %v924, %v941
        %v979 = vadd.f32 %v925, %v945
        %v980 = vadd.f32 %v926, %v949
        %v981 = vadd.f32 %v927, %v953
        %v982 = vadd.f32 %v928, %v941
        %v983 = vadd.f32 %v929, %v945
        %v984 = vadd.f32 %v930, %v949
        %v985 = vadd.f32 %v931, %v953
        %v986 = vadd.f32 %v932, %v941
        %v987 = vadd.f32 %v933, %v945
        %v988 = vadd.f32 %v934, %v949
        %v989 = vadd.f32 %v935, %v953
        %v990 = vmax.f32 %v958, 0.0
        %v991 = vmax.f32 %v959, 0.0
        %v992 = vmax.f32 %v960, 0.0
        %v993 = vmax.f32 %v961, 0.0
        %v994 = vmax.f32 %v962, 0.0
        %v995 = vmax.f32 %v963, 0.0
        %v996 = vmax.f32 %v964, 0.0
        %v997 = vmax.f32 %v965, 0.0
        %v998 = vmax.f32 %v966, 0.0
        %v999 = vmax.f32 %v967, 0.0
        %v1000 = vmax.f32 %v968, 0.0
        %v1001 = vmax.f32 %v969, 0.0
        %v1002 = vmax.f32 %v970, 0.0
        %v1003 = vmax.f32 %v971, 0.0
        %v1004 = vmax.f32 %v972, 0.0
        %v1005 = vmax.f32 %v973, 0.0
        %v1006 = vmax.f32 %v974, 0.0
        %v1007 = vmax.f32 %v975, 0.0
        %v1008 = vmax.f32 %v976, 0.0
        %v1009 = vmax.f32 %v977, 0.0
        %v1010 = vmax.f32 %v978, 0.0
        %v1011 = vmax.f32 %v979, 0.0
        %v1012 = vmax.f32 %v980, 0.0
        %v1013 = vmax.f32 %v981, 0.0
        %v1014 = vmax.f32 %v982, 0.0
        %v1015 = vmax.f32 %v983, 0.0
        %v1016 = vmax.f32 %v984, 0.0
        %v1017 = vmax.f32 %v985, 0.0
        %v1018 = vmax.f32 %v986, 0.0
        %v1019 = vmax.f32 %v987, 0.0
        %v1020 = vmax.f32 %v988, 0.0
        %v1021 = vmax.f32 %v989, 0.0
        %v1022 = vpack.c.bf16 %v994, %v990
        %v1023 = vpack.c.bf16 %v995, %v991
        %v1024 = vpack.c.bf16 %v996, %v992
        %v1025 = vpack.c.bf16 %v997, %v993
        %v1026 = vpack.c.bf16 %v1002, %v998
        %v1027 = vpack.c.bf16 %v1003, %v999
        %v1028 = vpack.c.bf16 %v1004, %v1000
        %v1029 = vpack.c.bf16 %v1005, %v1001
        %v1030 = vpack.c.bf16 %v1010, %v1006
        %v1031 = vpack.c.bf16 %v1011, %v1007
        %v1032 = vpack.c.bf16 %v1012, %v1008
        %v1033 = vpack.c.bf16 %v1013, %v1009
        %v1034 = vpack.c.bf16 %v1018, %v1014
        %v1035 = vpack.c.bf16 %v1019, %v1015
        %v1036 = vpack.c.bf16 %v1020, %v1016
        %v1037 = vpack.c.bf16 %v1021, %v1017
        %v1038 = vld [vmem:[%s5] sm:$0xf]
        %v1039 = vld [vmem:[%s5 + $0x4] sm:$0xf]
        %v1040 = vld [vmem:[%s5 + $0x8] sm:$0xf]
        %v1041 = vld [vmem:[%s5 + $0xc] sm:$0xf]
        %v1042 = vld [vmem:[%s5 + $0x10] sm:$0xf]
        %v1043 = vld [vmem:[%s5 + $0x14] sm:$0xf]
        %v1044 = vld [vmem:[%s5 + $0x18] sm:$0xf]
        %v1045 = vld [vmem:[%s5 + $0x1c] sm:$0xf]
        %v1046 = vld [vmem:[%s5 + $0x20] sm:$0xf]
        %v1047 = vld [vmem:[%s5 + $0x24] sm:$0xf]
        %v1048 = vld [vmem:[%s5 + $0x28] sm:$0xf]
        %v1049 = vld [vmem:[%s5 + $0x2c] sm:$0xf]
        %v1050 = vld [vmem:[%s5 + $0x30] sm:$0xf]
        %v1051 = vld [vmem:[%s5 + $0x34] sm:$0xf]
        %v1052 = vld [vmem:[%s5 + $0x38] sm:$0xf]
        %v1053 = vld [vmem:[%s5 + $0x3c] sm:$0xf]
        %v1054 = vld [vmem:[%s5 + $0x40] sm:$0xf]
        %v1055 = vld [vmem:[%s5 + $0x44] sm:$0xf]
        %v1056 = vld [vmem:[%s5 + $0x48] sm:$0xf]
        %v1057 = vld [vmem:[%s5 + $0x4c] sm:$0xf]
        %v1058 = vld [vmem:[%s5 + $0x50] sm:$0xf]
        %v1059 = vld [vmem:[%s5 + $0x54] sm:$0xf]
        %v1060 = vld [vmem:[%s5 + $0x58] sm:$0xf]
        %v1061 = vld [vmem:[%s5 + $0x5c] sm:$0xf]
        %v1062 = vld [vmem:[%s5 + $0x60] sm:$0xf]
        %v1063 = vld [vmem:[%s5 + $0x64] sm:$0xf]
        %v1064 = vld [vmem:[%s5 + $0x68] sm:$0xf]
        %v1065 = vld [vmem:[%s5 + $0x6c] sm:$0xf]
        %v1066 = vld [vmem:[%s5 + $0x70] sm:$0xf]
        %v1067 = vld [vmem:[%s5 + $0x74] sm:$0xf]
        %v1068 = vld [vmem:[%s5 + $0x78] sm:$0xf]
        %v1069 = vld [vmem:[%s5 + $0x7c] sm:$0xf]
        %v1070 = vld [vmem:[%s5 + $0x80] sm:$0xf]
        %v1071 = vld [vmem:[%s5 + $0x84] sm:$0xf]
        %v1072 = vld [vmem:[%s5 + $0x88] sm:$0xf]
        %v1073 = vld [vmem:[%s5 + $0x8c] sm:$0xf]
        %v1074 = vld [vmem:[%s5 + $0x90] sm:$0xf]
        %v1075 = vld [vmem:[%s5 + $0x94] sm:$0xf]
        %v1076 = vld [vmem:[%s5 + $0x98] sm:$0xf]
        %v1077 = vld [vmem:[%s5 + $0x9c] sm:$0xf]
        %v1078 = vld [vmem:[%s5 + $0xa0] sm:$0xf]
        %v1079 = vld [vmem:[%s5 + $0xa4] sm:$0xf]
        %v1080 = vld [vmem:[%s5 + $0xa8] sm:$0xf]
        %v1081 = vld [vmem:[%s5 + $0xac] sm:$0xf]
        %v1082 = vld [vmem:[%s5 + $0xb0] sm:$0xf]
        %v1083 = vld [vmem:[%s5 + $0xb4] sm:$0xf]
        %v1084 = vld [vmem:[%s5 + $0xb8] sm:$0xf]
        %v1085 = vld [vmem:[%s5 + $0xbc] sm:$0xf]
        %v1086 = vld [vmem:[%s5 + $0xc0] sm:$0xf]
        %v1087 = vld [vmem:[%s5 + $0xc4] sm:$0xf]
        %v1088 = vld [vmem:[%s5 + $0xc8] sm:$0xf]
        %v1089 = vld [vmem:[%s5 + $0xcc] sm:$0xf]
        %v1090 = vld [vmem:[%s5 + $0xd0] sm:$0xf]
        %v1091 = vld [vmem:[%s5 + $0xd4] sm:$0xf]
        %v1092 = vld [vmem:[%s5 + $0xd8] sm:$0xf]
        %v1093 = vld [vmem:[%s5 + $0xdc] sm:$0xf]
        %v1094 = vld [vmem:[%s5 + $0xe0] sm:$0xf]
        %v1095 = vld [vmem:[%s5 + $0xe4] sm:$0xf]
        %v1096 = vld [vmem:[%s5 + $0xe8] sm:$0xf]
        %v1097 = vld [vmem:[%s5 + $0xec] sm:$0xf]
        %v1098 = vld [vmem:[%s5 + $0xf0] sm:$0xf]
        %v1099 = vld [vmem:[%s5 + $0xf4] sm:$0xf]
        %v1100 = vld [vmem:[%s5 + $0xf8] sm:$0xf]
        %v1101 = vld [vmem:[%s5 + $0xfc] sm:$0xf]
        %v1102 = vld [vmem:[%s6] sm:$0x1]
        %v1104 = vlaneseq
        %v1105 = vshrl.u32 %v1104, 7
        %v1106 = vsub.s32 0, %v1105
        %v1107 = vrot.slane %v1102, %v1106
        %v1173 = vunpack.c.l.b16 %v1038
        %v1174 = vunpack.c.l.b16 %v1039
        %v1175 = vunpack.c.l.b16 %v1040
        %v1176 = vunpack.c.l.b16 %v1041
        %v1177 = vunpack.c.l.b16 %v1042
        %v1178 = vunpack.c.l.b16 %v1043
        %v1179 = vunpack.c.l.b16 %v1044
        %v1180 = vunpack.c.l.b16 %v1045
        %v1181 = vunpack.c.l.b16 %v1046
        %v1182 = vunpack.c.l.b16 %v1047
        %v1183 = vunpack.c.l.b16 %v1048
        %v1184 = vunpack.c.l.b16 %v1049
        %v1185 = vunpack.c.l.b16 %v1050
        %v1186 = vunpack.c.l.b16 %v1051
        %v1187 = vunpack.c.l.b16 %v1052
        %v1188 = vunpack.c.l.b16 %v1053
        %v1189 = vunpack.c.l.b16 %v1054
        %v1190 = vunpack.c.l.b16 %v1055
        %v1191 = vunpack.c.l.b16 %v1056
        %v1192 = vunpack.c.l.b16 %v1057
        %v1193 = vunpack.c.l.b16 %v1058
        %v1194 = vunpack.c.l.b16 %v1059
        %v1195 = vunpack.c.l.b16 %v1060
        %v1196 = vunpack.c.l.b16 %v1061
        %v1197 = vunpack.c.l.b16 %v1062
        %v1198 = vunpack.c.l.b16 %v1063
        %v1199 = vunpack.c.l.b16 %v1064
        %v1200 = vunpack.c.l.b16 %v1065
        %v1201 = vunpack.c.l.b16 %v1066
        %v1202 = vunpack.c.l.b16 %v1067
        %v1203 = vunpack.c.l.b16 %v1068
        %v1204 = vunpack.c.l.b16 %v1069
        %v1205 = vunpack.c.l.b16 %v1070
        %v1206 = vunpack.c.l.b16 %v1071
        %v1207 = vunpack.c.l.b16 %v1072
        %v1208 = vunpack.c.l.b16 %v1073
        %v1209 = vunpack.c.l.b16 %v1074
        %v1210 = vunpack.c.l.b16 %v1075
        %v1211 = vunpack.c.l.b16 %v1076
        %v1212 = vunpack.c.l.b16 %v1077
        %v1213 = vunpack.c.l.b16 %v1078
        %v1214 = vunpack.c.l.b16 %v1079
        %v1215 = vunpack.c.l.b16 %v1080
        %v1216 = vunpack.c.l.b16 %v1081
        %v1217 = vunpack.c.l.b16 %v1082
        %v1218 = vunpack.c.l.b16 %v1083
        %v1219 = vunpack.c.l.b16 %v1084
        %v1220 = vunpack.c.l.b16 %v1085
        %v1221 = vunpack.c.l.b16 %v1086
        %v1222 = vunpack.c.l.b16 %v1087
        %v1223 = vunpack.c.l.b16 %v1088
        %v1224 = vunpack.c.l.b16 %v1089
        %v1225 = vunpack.c.l.b16 %v1090
        %v1226 = vunpack.c.l.b16 %v1091
        %v1227 = vunpack.c.l.b16 %v1092
        %v1228 = vunpack.c.l.b16 %v1093
        %v1229 = vunpack.c.l.b16 %v1094
        %v1230 = vunpack.c.l.b16 %v1095
        %v1231 = vunpack.c.l.b16 %v1096
        %v1232 = vunpack.c.l.b16 %v1097
        %v1233 = vunpack.c.l.b16 %v1098
        %v1234 = vunpack.c.l.b16 %v1099
        %v1235 = vunpack.c.l.b16 %v1100
        %v1236 = vunpack.c.l.b16 %v1101
        %v1237 = vpack.c.b16 %v1174, %v1173
        %v1238 = vpack.c.b16 %v1176, %v1175
        %v1239 = vpack.c.b16 %v1178, %v1177
        %v1240 = vpack.c.b16 %v1180, %v1179
        %v1241 = vpack.c.b16 %v1182, %v1181
        %v1242 = vpack.c.b16 %v1184, %v1183
        %v1243 = vpack.c.b16 %v1186, %v1185
        %v1244 = vpack.c.b16 %v1188, %v1187
        %v1245 = vpack.c.b16 %v1190, %v1189
        %v1246 = vpack.c.b16 %v1192, %v1191
        %v1247 = vpack.c.b16 %v1194, %v1193
        %v1248 = vpack.c.b16 %v1196, %v1195
        %v1249 = vpack.c.b16 %v1198, %v1197
        %v1250 = vpack.c.b16 %v1200, %v1199
        %v1251 = vpack.c.b16 %v1202, %v1201
        %v1252 = vpack.c.b16 %v1204, %v1203
        %v1253 = vpack.c.b16 %v1206, %v1205
        %v1254 = vpack.c.b16 %v1208, %v1207
        %v1255 = vpack.c.b16 %v1210, %v1209
        %v1256 = vpack.c.b16 %v1212, %v1211
        %v1257 = vpack.c.b16 %v1214, %v1213
        %v1258 = vpack.c.b16 %v1216, %v1215
        %v1259 = vpack.c.b16 %v1218, %v1217
        %v1260 = vpack.c.b16 %v1220, %v1219
        %v1261 = vpack.c.b16 %v1222, %v1221
        %v1262 = vpack.c.b16 %v1224, %v1223
        %v1263 = vpack.c.b16 %v1226, %v1225
        %v1264 = vpack.c.b16 %v1228, %v1227
        %v1265 = vpack.c.b16 %v1230, %v1229
        %v1266 = vpack.c.b16 %v1232, %v1231
        %v1267 = vpack.c.b16 %v1234, %v1233
        %v1268 = vpack.c.b16 %v1236, %v1235
        %1301 = vmatprep.subr.bf16.mxu0 0
        %1302 = vmatpush1.bf16.msra.mxu0 %v1237
        %1303 = vmatprep.subr.bf16.mxu0 0
        %1304 = vmatpush1.bf16.msra.mxu0 %v1238
        %1305 = vmatprep.subr.bf16.mxu0 0
        %1306 = vmatpush1.bf16.msra.mxu0 %v1239
        %1307 = vmatprep.subr.bf16.mxu0 0
        %1308 = vmatpush1.bf16.msra.mxu0 %v1240
        %1309 = vmatprep.subr.bf16.mxu0 0
        %1310 = vmatpush1.bf16.msra.mxu0 %v1241
        %1311 = vmatprep.subr.bf16.mxu0 0
        %1312 = vmatpush1.bf16.msra.mxu0 %v1242
        %1313 = vmatprep.subr.bf16.mxu0 0
        %1314 = vmatpush1.bf16.msra.mxu0 %v1243
        %1315 = vmatprep.subr.bf16.mxu0 0
        %1316 = vmatpush1.bf16.msra.mxu0 %v1244
        %1317 = vmatprep.subr.bf16.mxu0 0
        %1318 = vmatpush1.bf16.msra.mxu0 %v1245
        %1319 = vmatprep.subr.bf16.mxu0 0
        %1320 = vmatpush1.bf16.msra.mxu0 %v1246
        %1321 = vmatprep.subr.bf16.mxu0 0
        %1322 = vmatpush1.bf16.msra.mxu0 %v1247
        %1323 = vmatprep.subr.bf16.mxu0 0
        %1324 = vmatpush1.bf16.msra.mxu0 %v1248
        %1325 = vmatprep.subr.bf16.mxu0 0
        %1326 = vmatpush1.bf16.msra.mxu0 %v1249
        %1327 = vmatprep.subr.bf16.mxu0 0
        %1328 = vmatpush1.bf16.msra.mxu0 %v1250
        %1329 = vmatprep.subr.bf16.mxu0 0
        %1330 = vmatpush1.bf16.msra.mxu0 %v1251
        %1331 = vmatprep.subr.bf16.mxu0 0
        %1332 = vmatpush1.bf16.msra.mxu0 %v1252
        %1333 = vmatprep.mubr.bf16.mxu0 %v1023
        %1334 = vmatmul.mubr.bf16.gmra.mrb[0].mxu0 %v1022
        %v1335 = vpop.f32.mrb[0].mxu0
        %v1336 = vadd.f32 %v1107, %v1335
        %v1337 = vpop.f32.mrb[0].mxu0
        %v1338 = vpop.f32.mrb[0].mxu0
        %v1339 = vadd.f32 %v1107, %v1338
        %v1340 = vpop.f32.mrb[0].mxu0
        %1341 = vmatprep.mubr.bf16.mxu0 %v1027
        %1342 = vmatmul.mubr.bf16.gmra.mrb[0].mxu0 %v1026
        %v1343 = vpop.f32.mrb[0].mxu0
        %v1344 = vadd.f32 %v1107, %v1343
        %v1345 = vpop.f32.mrb[0].mxu0
        %v1346 = vpop.f32.mrb[0].mxu0
        %v1347 = vadd.f32 %v1107, %v1346
        %v1348 = vpop.f32.mrb[0].mxu0
        %1349 = vmatprep.mubr.bf16.mxu0 %v1031
        %1350 = vmatmul.mubr.bf16.gmra.mrb[0].mxu0 %v1030
        %v1351 = vpop.f32.mrb[0].mxu0
        %v1352 = vadd.f32 %v1107, %v1351
        %v1353 = vpop.f32.mrb[0].mxu0
        %v1354 = vpop.f32.mrb[0].mxu0
        %v1355 = vadd.f32 %v1107, %v1354
        %v1356 = vpop.f32.mrb[0].mxu0
        %1357 = vmatprep.mubr.bf16.mxu0 %v1035
        %1358 = vmatmul.mubr.bf16.gmra.mrb[0].mxu0 %v1034
        %v1359 = vpop.f32.mrb[0].mxu0
        %v1360 = vadd.f32 %v1107, %v1359
        %v1361 = vpop.f32.mrb[0].mxu0
        %v1362 = vpop.f32.mrb[0].mxu0
        %v1363 = vadd.f32 %v1107, %v1362
        %v1364 = vpop.f32.mrb[0].mxu0
        %1365 = vdwg.mxu0
        %1366 = vmatprep.subr.bf16.mxu0 0
        %1367 = vmatpush1.bf16.msra.mxu0 %v1253
        %1368 = vmatprep.subr.bf16.mxu0 0
        %1369 = vmatpush1.bf16.msra.mxu0 %v1254
        %1370 = vmatprep.subr.bf16.mxu0 0
        %1371 = vmatpush1.bf16.msra.mxu0 %v1255
        %1372 = vmatprep.subr.bf16.mxu0 0
        %1373 = vmatpush1.bf16.msra.mxu0 %v1256
        %1374 = vmatprep.subr.bf16.mxu0 0
        %1375 = vmatpush1.bf16.msra.mxu0 %v1257
        %1376 = vmatprep.subr.bf16.mxu0 0
        %1377 = vmatpush1.bf16.msra.mxu0 %v1258
        %1378 = vmatprep.subr.bf16.mxu0 0
        %1379 = vmatpush1.bf16.msra.mxu0 %v1259
        %1380 = vmatprep.subr.bf16.mxu0 0
        %1381 = vmatpush1.bf16.msra.mxu0 %v1260
        %1382 = vmatprep.subr.bf16.mxu0 0
        %1383 = vmatpush1.bf16.msra.mxu0 %v1261
        %1384 = vmatprep.subr.bf16.mxu0 0
        %1385 = vmatpush1.bf16.msra.mxu0 %v1262
        %1386 = vmatprep.subr.bf16.mxu0 0
        %1387 = vmatpush1.bf16.msra.mxu0 %v1263
        %1388 = vmatprep.subr.bf16.mxu0 0
        %1389 = vmatpush1.bf16.msra.mxu0 %v1264
        %1390 = vmatprep.subr.bf16.mxu0 0
        %1391 = vmatpush1.bf16.msra.mxu0 %v1265
        %1392 = vmatprep.subr.bf16.mxu0 0
        %1393 = vmatpush1.bf16.msra.mxu0 %v1266
        %1394 = vmatprep.subr.bf16.mxu0 0
        %1395 = vmatpush1.bf16.msra.mxu0 %v1267
        %1396 = vmatprep.subr.bf16.mxu0 0
        %1397 = vmatpush1.bf16.msra.mxu0 %v1268
        %1398 = vmatprep.mubr.bf16.mxu0 %v1025
        %1399 = vmatmul.mubr.bf16.gmra.mrb[0].mxu0 %v1024
        %v1400 = vpop.f32.mrb[0].mxu0
        %v1401 = vadd.f32 %v1336, %v1400
        %v1402 = vpop.f32.mrb[0].mxu0
        %v1403 = vpop.f32.mrb[0].mxu0
        %v1404 = vadd.f32 %v1339, %v1403
        %v1405 = vpop.f32.mrb[0].mxu0
        %1406 = vmatprep.mubr.bf16.mxu0 %v1029
        %1407 = vmatmul.mubr.bf16.gmra.mrb[0].mxu0 %v1028
        %v1408 = vpop.f32.mrb[0].mxu0
        %v1409 = vadd.f32 %v1344, %v1408
        %v1410 = vpop.f32.mrb[0].mxu0
        %v1411 = vpop.f32.mrb[0].mxu0
        %v1412 = vadd.f32 %v1347, %v1411
        %v1413 = vpop.f32.mrb[0].mxu0
        %1414 = vmatprep.mubr.bf16.mxu0 %v1033
        %1415 = vmatmul.mubr.bf16.gmra.mrb[0].mxu0 %v1032
        %v1416 = vpop.f32.mrb[0].mxu0
        %v1417 = vadd.f32 %v1352, %v1416
        %v1418 = vpop.f32.mrb[0].mxu0
        %v1419 = vpop.f32.mrb[0].mxu0
        %v1420 = vadd.f32 %v1355, %v1419
        %v1421 = vpop.f32.mrb[0].mxu0
        %1422 = vmatprep.mubr.bf16.mxu0 %v1037
        %1423 = vmatmul.mubr.bf16.gmra.mrb[0].mxu0 %v1036
        %v1424 = vpop.f32.mrb[0].mxu0
        %v1425 = vadd.f32 %v1360, %v1424
        %v1426 = vpop.f32.mrb[0].mxu0
        %v1427 = vpop.f32.mrb[0].mxu0
        %v1428 = vadd.f32 %v1363, %v1427
        %v1429 = vpop.f32.mrb[0].mxu0
        %1430 = vdwg.mxu0
        %v1431 = vmax.f32 %v1401, 0.0
        %v1432 = vmax.f32 %v1404, 0.0
        %v1433 = vmax.f32 %v1409, 0.0
        %v1434 = vmax.f32 %v1412, 0.0
        %v1435 = vmax.f32 %v1417, 0.0
        %v1436 = vmax.f32 %v1420, 0.0
        %v1437 = vmax.f32 %v1425, 0.0
        %v1438 = vmax.f32 %v1428, 0.0
        %v1439 = vpack.c.bf16 %v1432, %v1431
        %v1440 = vpack.c.bf16 %v1434, %v1433
        %v1441 = vpack.c.bf16 %v1436, %v1435
        %v1442 = vpack.c.bf16 %v1438, %v1437
        %v1443 = vld [vmem:[%s8] sm:$0x1]
        %v1445 = vlaneseq
        %v1446 = vshrl.u32 %v1445, 7
        %v1447 = vsub.s32 0, %v1446
        %v1448 = vrot.slane %v1443, %v1447
        %v1450 = vadd.f32 %v1448, 0.0
        %v1451 = vld [vmem:[%s7] sm:$0xf]
        %v1452 = vld [vmem:[%s7 + $0x4] sm:$0xf]
        %v1453 = vld [vmem:[%s7 + $0x8] sm:$0xf]
        %v1454 = vld [vmem:[%s7 + $0xc] sm:$0xf]
        %v1459 = vunpack.c.l.b16 %v1451
        %v1460 = vunpack.c.l.b16 %v1452
        %v1461 = vunpack.c.l.b16 %v1453
        %v1462 = vunpack.c.l.b16 %v1454
        %v1463 = vpack.c.b16 %v1460, %v1459
        %v1464 = vpack.c.b16 %v1462, %v1461
        %v1468 = vsel %vm527, %v1439, 0
        %1470 = vmatprep.subr.bf16.mxu0 0
        %1471 = vmatpush1.bf16.msra.mxu0 %v1463
        %1472 = vmatprep.subr.bf16.mxu0 0
        %1473 = vmatpush1.bf16.msra.mxu0 %v1464
        %1474 = vmatprep.subr.bf16.mxu0 0
        %1475 = vmatpush1.bf16.msra.mxu0 0
        %1476 = vmatprep.subr.bf16.mxu0 0
        %1477 = vmatpush1.bf16.msra.mxu0 0
        %1478 = vmatprep.subr.bf16.mxu0 0
        %1479 = vmatpush1.bf16.msra.mxu0 0
        %1480 = vmatprep.subr.bf16.mxu0 0
        %1481 = vmatpush1.bf16.msra.mxu0 0
        %1482 = vmatprep.subr.bf16.mxu0 0
        %1483 = vmatpush1.bf16.msra.mxu0 0
        %1484 = vmatprep.subr.bf16.mxu0 0
        %1485 = vmatpush1.bf16.msra.mxu0 0
        %1486 = vmatprep.subr.bf16.mxu0 0
        %1487 = vmatpush1.bf16.msra.mxu0 0
        %1488 = vmatprep.subr.bf16.mxu0 0
        %1489 = vmatpush1.bf16.msra.mxu0 0
        %1490 = vmatprep.subr.bf16.mxu0 0
        %1491 = vmatpush1.bf16.msra.mxu0 0
        %1492 = vmatprep.subr.bf16.mxu0 0
        %1493 = vmatpush1.bf16.msra.mxu0 0
        %1494 = vmatprep.subr.bf16.mxu0 0
        %1495 = vmatpush1.bf16.msra.mxu0 0
        %1496 = vmatprep.subr.bf16.mxu0 0
        %1497 = vmatpush1.bf16.msra.mxu0 0
        %1498 = vmatprep.subr.bf16.mxu0 0
        %1499 = vmatpush1.bf16.msra.mxu0 0
        %1500 = vmatprep.subr.bf16.mxu0 0
        %1501 = vmatpush1.bf16.msra.mxu0 0
        %1502 = vmatprep.mubr.bf16.mxu0 0
        %1503 = vmatmul.mubr.bf16.gmra.mrb[0].mxu0 %v1468
        %v1504 = vpop.f32.mrb[0].mxu0
        %v1505 = vadd.f32 0.0, %v1504
        %v1506 = vpop.f32.mrb[0].mxu0
        %v1507 = vpop.f32.mrb[0].mxu0
        %v1508 = vadd.f32 0.0, %v1507
        %v1509 = vpop.f32.mrb[0].mxu0
        %1510 = vdwg.mxu0
        %v1511 = vadd.f32 %v1450, %v1505
        %v1512 = vadd.f32 %v1450, %v1508
        %v1513 = vld [vmem:[%s7 + $0x10] sm:$0xf]
        %v1514 = vld [vmem:[%s7 + $0x14] sm:$0xf]
        %v1515 = vld [vmem:[%s7 + $0x18] sm:$0xf]
        %v1516 = vld [vmem:[%s7 + $0x1c] sm:$0xf]
        %v1521 = vunpack.c.l.b16 %v1513
        %v1522 = vunpack.c.l.b16 %v1514
        %v1523 = vunpack.c.l.b16 %v1515
        %v1524 = vunpack.c.l.b16 %v1516
        %v1525 = vpack.c.b16 %v1522, %v1521
        %v1526 = vpack.c.b16 %v1524, %v1523
        %v1530 = vsel %vm527, %v1440, 0
        %1532 = vmatprep.subr.bf16.mxu0 0
        %1533 = vmatpush1.bf16.msra.mxu0 %v1525
        %1534 = vmatprep.subr.bf16.mxu0 0
        %1535 = vmatpush1.bf16.msra.mxu0 %v1526
        %1536 = vmatprep.subr.bf16.mxu0 0
        %1537 = vmatpush1.bf16.msra.mxu0 0
        %1538 = vmatprep.subr.bf16.mxu0 0
        %1539 = vmatpush1.bf16.msra.mxu0 0
        %1540 = vmatprep.subr.bf16.mxu0 0
        %1541 = vmatpush1.bf16.msra.mxu0 0
        %1542 = vmatprep.subr.bf16.mxu0 0
        %1543 = vmatpush1.bf16.msra.mxu0 0
        %1544 = vmatprep.subr.bf16.mxu0 0
        %1545 = vmatpush1.bf16.msra.mxu0 0
        %1546 = vmatprep.subr.bf16.mxu0 0
        %1547 = vmatpush1.bf16.msra.mxu0 0
        %1548 = vmatprep.subr.bf16.mxu0 0
        %1549 = vmatpush1.bf16.msra.mxu0 0
        %1550 = vmatprep.subr.bf16.mxu0 0
        %1551 = vmatpush1.bf16.msra.mxu0 0
        %1552 = vmatprep.subr.bf16.mxu0 0
        %1553 = vmatpush1.bf16.msra.mxu0 0
        %1554 = vmatprep.subr.bf16.mxu0 0
        %1555 = vmatpush1.bf16.msra.mxu0 0
        %1556 = vmatprep.subr.bf16.mxu0 0
        %1557 = vmatpush1.bf16.msra.mxu0 0
        %1558 = vmatprep.subr.bf16.mxu0 0
        %1559 = vmatpush1.bf16.msra.mxu0 0
        %1560 = vmatprep.subr.bf16.mxu0 0
        %1561 = vmatpush1.bf16.msra.mxu0 0
        %1562 = vmatprep.subr.bf16.mxu0 0
        %1563 = vmatpush1.bf16.msra.mxu0 0
        %1564 = vmatprep.mubr.bf16.mxu0 0
        %1565 = vmatmul.mubr.bf16.gmra.mrb[0].mxu0 %v1530
        %v1566 = vpop.f32.mrb[0].mxu0
        %v1567 = vadd.f32 0.0, %v1566
        %v1568 = vpop.f32.mrb[0].mxu0
        %v1569 = vpop.f32.mrb[0].mxu0
        %v1570 = vadd.f32 0.0, %v1569
        %v1571 = vpop.f32.mrb[0].mxu0
        %1572 = vdwg.mxu0
        %v1573 = vadd.f32 %v1511, %v1567
        %v1574 = vadd.f32 %v1512, %v1570
        %v1575 = vld [vmem:[%s7 + $0x20] sm:$0xf]
        %v1576 = vld [vmem:[%s7 + $0x24] sm:$0xf]
        %v1577 = vld [vmem:[%s7 + $0x28] sm:$0xf]
        %v1578 = vld [vmem:[%s7 + $0x2c] sm:$0xf]
        %v1583 = vunpack.c.l.b16 %v1575
        %v1584 = vunpack.c.l.b16 %v1576
        %v1585 = vunpack.c.l.b16 %v1577
        %v1586 = vunpack.c.l.b16 %v1578
        %v1587 = vpack.c.b16 %v1584, %v1583
        %v1588 = vpack.c.b16 %v1586, %v1585
        %v1592 = vsel %vm527, %v1441, 0
        %1594 = vmatprep.subr.bf16.mxu0 0
        %1595 = vmatpush1.bf16.msra.mxu0 %v1587
        %1596 = vmatprep.subr.bf16.mxu0 0
        %1597 = vmatpush1.bf16.msra.mxu0 %v1588
        %1598 = vmatprep.subr.bf16.mxu0 0
        %1599 = vmatpush1.bf16.msra.mxu0 0
        %1600 = vmatprep.subr.bf16.mxu0 0
        %1601 = vmatpush1.bf16.msra.mxu0 0
        %1602 = vmatprep.subr.bf16.mxu0 0
        %1603 = vmatpush1.bf16.msra.mxu0 0
        %1604 = vmatprep.subr.bf16.mxu0 0
        %1605 = vmatpush1.bf16.msra.mxu0 0
        %1606 = vmatprep.subr.bf16.mxu0 0
        %1607 = vmatpush1.bf16.msra.mxu0 0
        %1608 = vmatprep.subr.bf16.mxu0 0
        %1609 = vmatpush1.bf16.msra.mxu0 0
        %1610 = vmatprep.subr.bf16.mxu0 0
        %1611 = vmatpush1.bf16.msra.mxu0 0
        %1612 = vmatprep.subr.bf16.mxu0 0
        %1613 = vmatpush1.bf16.msra.mxu0 0
        %1614 = vmatprep.subr.bf16.mxu0 0
        %1615 = vmatpush1.bf16.msra.mxu0 0
        %1616 = vmatprep.subr.bf16.mxu0 0
        %1617 = vmatpush1.bf16.msra.mxu0 0
        %1618 = vmatprep.subr.bf16.mxu0 0
        %1619 = vmatpush1.bf16.msra.mxu0 0
        %1620 = vmatprep.subr.bf16.mxu0 0
        %1621 = vmatpush1.bf16.msra.mxu0 0
        %1622 = vmatprep.subr.bf16.mxu0 0
        %1623 = vmatpush1.bf16.msra.mxu0 0
        %1624 = vmatprep.subr.bf16.mxu0 0
        %1625 = vmatpush1.bf16.msra.mxu0 0
        %1626 = vmatprep.mubr.bf16.mxu0 0
        %1627 = vmatmul.mubr.bf16.gmra.mrb[0].mxu0 %v1592
        %v1628 = vpop.f32.mrb[0].mxu0
        %v1629 = vadd.f32 0.0, %v1628
        %v1630 = vpop.f32.mrb[0].mxu0
        %v1631 = vpop.f32.mrb[0].mxu0
        %v1632 = vadd.f32 0.0, %v1631
        %v1633 = vpop.f32.mrb[0].mxu0
        %1634 = vdwg.mxu0
        %v1635 = vadd.f32 %v1573, %v1629
        %v1636 = vadd.f32 %v1574, %v1632
        %v1637 = vld [vmem:[%s7 + $0x30] sm:$0xf]
        %v1638 = vld [vmem:[%s7 + $0x34] sm:$0xf]
        %v1639 = vld [vmem:[%s7 + $0x38] sm:$0xf]
        %v1640 = vld [vmem:[%s7 + $0x3c] sm:$0xf]
        %v1645 = vunpack.c.l.b16 %v1637
        %v1646 = vunpack.c.l.b16 %v1638
        %v1647 = vunpack.c.l.b16 %v1639
        %v1648 = vunpack.c.l.b16 %v1640
        %v1649 = vpack.c.b16 %v1646, %v1645
        %v1650 = vpack.c.b16 %v1648, %v1647
        %v1654 = vsel %vm527, %v1442, 0
        %1656 = vmatprep.subr.bf16.mxu0 0
        %1657 = vmatpush1.bf16.msra.mxu0 %v1649
        %1658 = vmatprep.subr.bf16.mxu0 0
        %1659 = vmatpush1.bf16.msra.mxu0 %v1650
        %1660 = vmatprep.subr.bf16.mxu0 0
        %1661 = vmatpush1.bf16.msra.mxu0 0
        %1662 = vmatprep.subr.bf16.mxu0 0
        %1663 = vmatpush1.bf16.msra.mxu0 0
        %1664 = vmatprep.subr.bf16.mxu0 0
        %1665 = vmatpush1.bf16.msra.mxu0 0
        %1666 = vmatprep.subr.bf16.mxu0 0
        %1667 = vmatpush1.bf16.msra.mxu0 0
        %1668 = vmatprep.subr.bf16.mxu0 0
        %1669 = vmatpush1.bf16.msra.mxu0 0
        %1670 = vmatprep.subr.bf16.mxu0 0
        %1671 = vmatpush1.bf16.msra.mxu0 0
        %1672 = vmatprep.subr.bf16.mxu0 0
        %1673 = vmatpush1.bf16.msra.mxu0 0
        %1674 = vmatprep.subr.bf16.mxu0 0
        %1675 = vmatpush1.bf16.msra.mxu0 0
        %1676 = vmatprep.subr.bf16.mxu0 0
        %1677 = vmatpush1.bf16.msra.mxu0 0
        %1678 = vmatprep.subr.bf16.mxu0 0
        %1679 = vmatpush1.bf16.msra.mxu0 0
        %1680 = vmatprep.subr.bf16.mxu0 0
        %1681 = vmatpush1.bf16.msra.mxu0 0
        %1682 = vmatprep.subr.bf16.mxu0 0
        %1683 = vmatpush1.bf16.msra.mxu0 0
        %1684 = vmatprep.subr.bf16.mxu0 0
        %1685 = vmatpush1.bf16.msra.mxu0 0
        %1686 = vmatprep.subr.bf16.mxu0 0
        %1687 = vmatpush1.bf16.msra.mxu0 0
        %1688 = vmatprep.mubr.bf16.mxu0 0
        %1689 = vmatmul.mubr.bf16.gmra.mrb[0].mxu0 %v1654
        %v1690 = vpop.f32.mrb[0].mxu0
        %v1691 = vadd.f32 0.0, %v1690
        %v1692 = vpop.f32.mrb[0].mxu0
        %v1693 = vpop.f32.mrb[0].mxu0
        %v1694 = vadd.f32 0.0, %v1693
        %v1695 = vpop.f32.mrb[0].mxu0
        %1696 = vdwg.mxu0
        %v1697 = vadd.f32 %v1635, %v1691
        %v1698 = vadd.f32 %v1636, %v1694
        %vm1699 = vcmask 31744
        %v1700 = vsel %vm1699, %v1697, -inf
        %1701 = vmax.xlane.f32.xlu0 %v1700
        %v1702 = vpop.xlane.xlu0 %1701
        %v1703 = vsel %vm1699, %v1698, -inf
        %1704 = vmax.xlane.f32.xlu0 %v1703
        %v1705 = vpop.xlane.xlu0 %1704
        %v1706 = vsub.f32 %v1697, %v1702
        %v1707 = vsub.f32 %v1698, %v1705
        %v1708 = vmul.f32 %v1706, 1.442695
        %v1709 = vpow.pop %v1708
        %v1710 = vmul.f32 %v1707, 1.442695
        %v1711 = vpow.pop %v1710
        %v1712 = vsel %vm1699, %v1709, 0.0
        %1713 = vadd.xlane.f32.xlu0 %v1712
        %v1714 = vpop.xlane.xlu0 %1713
        %v1715 = vsel %vm1699, %v1711, 0.0
        %1716 = vadd.xlane.f32.xlu0 %v1715
        %v1717 = vpop.xlane.xlu0 %1716
        %v1718 = vrcp.pop %v1714
        %v1719 = vrcp.pop %v1717
        %v1720 = vmul.f32 %v1709, %v1718
        %v1721 = vmul.f32 %v1711, %v1719
        %1723 = vset.pattern.permute.xlu0 0
        %1724 = vperm.xlu0 %1723, %v1720
        %v1725 = vpop.permute.xlu0 %1724
        %1728 = vset.pattern.permute.xlu0 0
        %1729 = vperm.xlu0 %1728, %v1721
        %v1730 = vpop.permute.xlu0 %1729
        %v1732 = vmul.f32 %v1431, %v1725
        %v1733 = vmul.f32 %v1432, %v1730
        %v1734 = vadd.f32 %v1732, 0.0
        %v1735 = vadd.f32 %v1733, 0.0
        %1736 = vset.pattern.permute.xlu0 1
        %1737 = vperm.xlu0 %1736, %v1720
        %v1738 = vpop.permute.xlu0 %1737
        %1740 = vset.pattern.permute.xlu0 1
        %1741 = vperm.xlu0 %1740, %v1721
        %v1742 = vpop.permute.xlu0 %1741
        %v1744 = vmul.f32 %v1433, %v1738
        %v1745 = vmul.f32 %v1434, %v1742
        %v1746 = vadd.f32 %v1734, %v1744
        %v1747 = vadd.f32 %v1735, %v1745
        %1748 = vset.pattern.permute.xlu0 2
        %1749 = vperm.xlu0 %1748, %v1720
        %v1750 = vpop.permute.xlu0 %1749
        %1752 = vset.pattern.permute.xlu0 2
        %1753 = vperm.xlu0 %1752, %v1721
        %v1754 = vpop.permute.xlu0 %1753
        %v1756 = vmul.f32 %v1435, %v1750
        %v1757 = vmul.f32 %v1436, %v1754
        %v1758 = vadd.f32 %v1746, %v1756
        %v1759 = vadd.f32 %v1747, %v1757
        %1760 = vset.pattern.permute.xlu0 3
        %1761 = vperm.xlu0 %1760, %v1720
        %v1762 = vpop.permute.xlu0 %1761
        %1764 = vset.pattern.permute.xlu0 3
        %1765 = vperm.xlu0 %1764, %v1721
        %v1766 = vpop.permute.xlu0 %1765
        %v1768 = vmul.f32 %v1437, %v1762
        %v1769 = vmul.f32 %v1438, %v1766
        %v1770 = vadd.f32 %v1758, %v1768
        %v1771 = vadd.f32 %v1759, %v1769
        %1772 = vst.msk [vmem:[%s325] sm:$0xff] %vm527, %v1770
        %1773 = vst.msk [vmem:[%s325 + $0x8] sm:$0xff] %vm527, %v1771
        %s1774 = sand.u32 %s225, 1
        %s1775 = scalar_lea.sflag [#allocation3], %s1774
        %s1776 = sand.u32 %s225, 1
        %s1777 = smul.addr %s1776, 16
        %s1778 = scalar_lea.vmem [#allocation2], %s1777
        // Predicated region
        $region57: #{tpu_custom_call.1} parent=55 // pred_check
          %p1779 = pneg %p235
        $region58: #{tpu_custom_call.1} parent=55 // pred_check_branch
          %1781 = sbr.rel (%p1779) target = $region60
        $region59: #{tpu_custom_call.1} parent=55 // pred_region
          %s1782 = smul.u32 2, %s23
          %s1784 = ssub.s32 256, 256
          %1785 = vsyncadd %s1775, %s1784
          %s1786 = smul.addr %s1782, 128
          %s1787 = scalar_lea.hbm %s9, %s1786
          %s1788 = sshll.u32 %s1778, 4
          %s1789 = int_to_ptr.vmem [resolvable:$true] %s1788
          %1794 = dma.vmem_to_hbm [thread:$0]  %s1789, 256, %s1787, %s1775, 128, 128, 8
        $region60: #{tpu_custom_call.1} parent=55 // pred_fallthru
          _
      $region56: #{tpu_custom_call.1} parent=5 // pred_fallthru
        _
      %p1795 = scmp.le.s32.totalorder 2, %s18
      // Predicated region
      $region61: #{tpu_custom_call.1} parent=5 // pred_check
        %p1796 = pneg %p1795
      $region62: #{tpu_custom_call.1} parent=5 // pred_check_branch
        %1798 = sbr.rel (%p1796) target = $region64
      $region63: #{tpu_custom_call.1} parent=5 // pred_region
        %s1799 = ssub.s32 %s18, 2
        // Predicated region
        $region65: #{tpu_custom_call.1} parent=63 // pred_check
          %p1800 = pneg %p241
        $region66: #{tpu_custom_call.1} parent=63 // pred_check_branch
          %1802 = sbr.rel (%p1800) target = $region68
        $region67: #{tpu_custom_call.1} parent=63 // pred_region
          %s1803 = sand.u32 %s226, 1
          %s1804 = scalar_lea.sflag [#allocation3], %s1803
          %s1805 = sand.u32 %s226, 1
          %s1806 = smul.addr %s1805, 16
          %s1807 = scalar_lea.vmem [#allocation2], %s1806
          %1808 = dma.done %s1804, 256
        $region68: #{tpu_custom_call.1} parent=63 // pred_fallthru
          _
      $region64: #{tpu_custom_call.1} parent=5 // pred_fallthru
        _
    $region6: #{tpu_custom_call.1} parent=1 // loop_footer
      %s22 = sadd.s32 1, %s18
    $region7: #{tpu_custom_call.1} parent=1 // loop_footer_branch
      %17 = sbr.rel target = $region3
    $region8: #{tpu_custom_call.1} parent=1 // loop_exit
      _
    %1809 = vsyncpa [#allocation3], 1
    %s1810 = scalar_lea.sflag [#allocation3], 1
    %1811 = vsyncpa %s1810, 1

</llo_original>
